<compile_context>
chip_gen: v6e
topology: v6e:2x2x1
jax: 0.10.0
libtpu: 0.0.40
codegen_flags: <defaults>
</compile_context>

<pallas_src>
import functools

import jax
import jax.numpy as jnp
from jax import lax
from jax.experimental import pallas as pl
from jax.experimental.pallas import tpu as pltpu


# ----------------------------- kernel ----------------------------------------
def _egilr_kernel(x_ref, win_ref, bin_ref, wmid_ref, bmid_ref, wout_ref, bout_ref,
                  out_ref, hid_ref,
                  fbuf, wbuf, pbuf, obuf, h1c, h2c, *, S):
    # x_ref   : (1, Tc*B, IN) bf16, rows in (j, s, b) order (see wrapper)
    # win_ref : (1, IN, 2D) bf16   bin_ref : (1, 1, 2D) f32   [v | f] heads fused
    # wmid_ref: (1, D, 4D) bf16    bmid_ref: (1, 1, 4D) f32   [f|i|o|z] heads fused
    # wout_ref: (1, D, D) bf16     bout_ref: (1, 1, D) f32
    # out_ref : (1, Tc*B, D) f32   hid_ref : (1, B, 2D) f32
    # fbuf/wbuf/pbuf/obuf : (Tc*B, D) f32 scratch ; h1c/h2c : (B, D) f32 carries
    rows = x_ref.shape[1]            # Tc * B
    D = out_ref.shape[2]
    B = hid_ref.shape[1]
    Tc = rows // B
    L = Tc // S
    SB = S * B
    f32 = jnp.float32

    c = pl.program_id(1)
    last_c = pl.num_programs(1) - 1

    @pl.when(c == 0)
    def _():
        h1c[...] = jnp.zeros_like(h1c)
        h2c[...] = jnp.zeros_like(h2c)

    def gilr_scan(hcarry_ref):
        """h_t = f_t*h_{t-1} + w_t over this chunk (gates in fbuf/wbuf).

        Returns all h_t (rows, D) in chunk row order and updates the
        cross-chunk carry ref with the last state."""
        if SB % 8 == 0 and S > 1:
            # Sub-chunk-parallel scan: S sub-chunks advance together on a full
            # sublane-aligned (S*B, D) slab per step; serial chain = L + S.
            def body(j, st):
                h, p = st
                base = pl.multiple_of(j * SB, SB)
                fj = fbuf[pl.ds(base, SB), :]
                h = fj * h + wbuf[pl.ds(base, SB), :]
                p = p * fj
                wbuf[pl.ds(base, SB), :] = h          # partial scan (started from 0)
                pbuf[pl.ds(base, SB), :] = p          # running prod of f
                return h, p

            hF, pF = lax.fori_loop(
                0, L, body,
                (jnp.zeros((SB, D), f32), jnp.ones((SB, D), f32)),
                unroll=min(L, 8))

            # Short serial fix-up across sub-chunks (S small).
            carry = hcarry_ref[...]
            parts = []
            for s in range(S):
                parts.append(carry)
                carry = pF[s * B:(s + 1) * B, :] * carry + hF[s * B:(s + 1) * B, :]
            hcarry_ref[...] = carry
            carr = jnp.concatenate(parts, axis=0)     # (S*B, D) carry entering each sub-chunk

            # Bulk correction: h_true = partial + cumprod(f) * carry_in.
            w3 = wbuf[...].reshape(L, SB, D)
            p3 = pbuf[...].reshape(L, SB, D)
            return (w3 + p3 * carr[None, :, :]).reshape(rows, D)
        else:
            # Fallback: plain serial scan carried in vregs (row order is (t, b)).
            def body(t, h):
                r = pl.ds(t * B, B)
                h = fbuf[r, :] * h + wbuf[r, :]
                wbuf[r, :] = h
                return h

            h = lax.fori_loop(0, Tc, body, hcarry_ref[...], unroll=min(Tc, 8))
            hcarry_ref[...] = h
            return wbuf[...]

    # ---- in_proj: one fused (rows, IN) x (IN, 2D) bf16 matmul, f32 accum ------
    u = jnp.dot(x_ref[0], win_ref[0], preferred_element_type=f32) + bin_ref[0]
    # Lane-dense nonlinearity over the fused tile: head0 = tanh, head1 = sigmoid,
    # using sigmoid(x) = 0.5*(1 + tanh(x/2)) so one tanh covers all 2D lanes.
    col2 = lax.broadcasted_iota(jnp.int32, (1, 2 * D), 1)
    tu = jnp.tanh(u * jnp.where(col2 < D, 1.0, 0.5))
    v = tu[:, 0:D]
    f = 0.5 * tu[:, D:2 * D] + 0.5
    fbuf[...] = f
    wbuf[...] = v - f * v                    # (1 - f) * v, hoisted out of the scan

    s1 = gilr_scan(h1c)                      # first GILR scan outputs (rows, D)

    # ---- middle_proj: one fused (rows, D) x (D, 4D) bf16 matmul ---------------
    g = jnp.dot(s1.astype(wmid_ref.dtype), wmid_ref[0],
                preferred_element_type=f32) + bmid_ref[0]
    col4 = lax.broadcasted_iota(jnp.int32, (1, 4 * D), 1)
    tg = jnp.tanh(g * jnp.where(col4 < 3 * D, 0.5, 1.0))
    f2 = 0.5 * tg[:, 0:D] + 0.5
    i2 = 0.5 * tg[:, D:2 * D] + 0.5
    o2 = 0.5 * tg[:, 2 * D:3 * D] + 0.5
    z2 = tg[:, 3 * D:4 * D]
    iz = i2 * z2
    fbuf[...] = f2
    obuf[...] = o2
    wbuf[...] = iz - f2 * iz                 # (1 - f2) * (i2 * z2)

    s2 = gilr_scan(h2c)                      # second GILR scan outputs

    # ---- out_proj --------------------------------------------------------------
    y = jnp.dot((s2 * obuf[...]).astype(wout_ref.dtype), wout_ref[0],
                preferred_element_type=f32) + bout_ref[0]
    out_ref[0] = y

    @pl.when(c == last_c)
    def _():
        hid_ref[0, :, 0:D] = h1c[...]
        hid_ref[0, :, D:2 * D] = h2c[...]


# ----------------------------- wrapper ----------------------------------------
def _choose_chunking(T, B, D):
    """Pick a time-chunk Tc (divides T, Tc*B % 8 == 0 unless full) keeping each
    f32 (Tc*B, D) scratch buffer <= ~1 MiB, and a sub-chunk count S (S | Tc,
    S*B % 8 == 0, S*B <= 32) minimizing the serial chain Tc/S + S."""
    max_rows = max(8, (1 << 20) // (4 * max(D, 1)))
    tc_best = T
    for tc in range(1, T + 1):
        if T % tc:
            continue
        rws = tc * B
        if rws % 8 != 0 and tc != T:
            continue
        if rws <= max_rows:
            tc_best = tc
    s_best, cost_best = 1, tc_best + 1
    for s in range(1, tc_best + 1):
        if tc_best % s or (s * B) % 8 or s * B > 32:
            continue
        cost = tc_best // s + s
        if cost < cost_best:
            s_best, cost_best = s, cost
    return tc_best, s_best


@jax.jit
def egilr_lstm_forward(x, params):
    """x: (E, B, T, IN) float32 -> (out (E,B,T,D), hidden (1, E*B, 2D))."""
    E, B, T, IN = x.shape
    D = params["W_out"].shape[-1]
    Tc, S = _choose_chunking(T, B, D)
    L = Tc // S
    nC = T // Tc
    rows = Tc * B
    bf16 = jnp.bfloat16

    # Fuse the ensemble heads along the output dim (one wide matmul per proj),
    # weights in bf16 (MXU runs bf16 passes anyway), biases kept f32.
    W_in2 = jnp.concatenate([params["W_in"][:, 0], params["W_in"][:, 1]], axis=-1).astype(bf16)
    b_in2 = jnp.concatenate([params["b_in"][:, 0], params["b_in"][:, 1]], axis=-1)
    W_mid2 = jnp.concatenate([params["W_mid"][:, h] for h in range(4)], axis=-1).astype(bf16)
    b_mid2 = jnp.concatenate([params["b_mid"][:, h] for h in range(4)], axis=-1)
    W_out = params["W_out"].astype(bf16)
    b_out = params["b_out"]

    # Row permutation (c, j, s, b): within each time chunk c the sub-chunk index s
    # is placed *inside* the within-sub-chunk offset j so that every scan step
    # reads/writes one contiguous, sublane-aligned (S*B, D) slab.  This is the
    # same single HBM transpose pass rev 2 already paid for time-major layout.
    x_k = (x.transpose(0, 2, 1, 3)                       # (E, T, B, IN)
             .reshape(E, nC, S, L, B, IN)
             .transpose(0, 1, 3, 2, 4, 5)                # (E, nC, L, S, B, IN)
             .reshape(E, T * B, IN)
             .astype(bf16))

    # Per-chunk VMEM budget (includes matmul/gate intermediates), capped < v7x's 64 MiB.
    bpc = (2 * rows * IN * 2                  # x block (bf16), double-buffered
           + 2 * rows * D * 4                 # out block (f32), double-buffered
           + 4 * rows * D * 4                 # fbuf / wbuf / pbuf / obuf scratch
           + 2 * B * D * 4                    # carried h1 / h2
           + rows * (2 * D + 4 * D) * 4 * 2   # u / g and fused-tanh tiles
           + rows * 10 * D * 4                # gate slices, s1 / s2, correction temps
           + 2 * 2 * (IN * 2 * D + D * 4 * D + D * D)   # bf16 weights, double-buffered
           + 2 * 4 * (2 * D + 4 * D + D))               # f32 biases, double-buffered
    vmem_limit = int(min(max(2 * bpc, 16 << 20), 48 << 20))

    grid_spec = pltpu.PrefetchScalarGridSpec(
        num_scalar_prefetch=0,
        grid=(E, nC),
        in_specs=[
            pl.BlockSpec((1, rows, IN), lambda e, c: (e, c, 0)),
            pl.BlockSpec((1, IN, 2 * D), lambda e, c: (e, 0, 0)),
            pl.BlockSpec((1, 1, 2 * D), lambda e, c: (e, 0, 0)),
            pl.BlockSpec((1, D, 4 * D), lambda e, c: (e, 0, 0)),
            pl.BlockSpec((1, 1, 4 * D), lambda e, c: (e, 0, 0)),
            pl.BlockSpec((1, D, D), lambda e, c: (e, 0, 0)),
            pl.BlockSpec((1, 1, D), lambda e, c: (e, 0, 0)),
        ],
        out_specs=[
            pl.BlockSpec((1, rows, D), lambda e, c: (e, c, 0)),
            pl.BlockSpec((1, B, 2 * D), lambda e, c: (e, 0, 0)),
        ],
        scratch_shapes=[
            pltpu.VMEM((rows, D), jnp.float32),   # fbuf (forget gate)
            pltpu.VMEM((rows, D), jnp.float32),   # wbuf (input / partial scan)
            pltpu.VMEM((rows, D), jnp.float32),   # pbuf (running prod of f)
            pltpu.VMEM((rows, D), jnp.float32),   # obuf (output gate)
            pltpu.VMEM((B, D), jnp.float32),      # h1 carry (persists across chunks)
            pltpu.VMEM((B, D), jnp.float32),      # h2 carry
        ],
    )

    out_k, hid_k = pl.pallas_call(
        functools.partial(_egilr_kernel, S=S),
        out_shape=(jax.ShapeDtypeStruct((E, T * B, D), jnp.float32),
                   jax.ShapeDtypeStruct((E, B, 2 * D), jnp.float32)),
        grid_spec=grid_spec,
        compiler_params=pltpu.CompilerParams(
            dimension_semantics=("parallel", "arbitrary"),
            vmem_limit_bytes=vmem_limit),
    )(x_k, W_in2, b_in2, W_mid2, b_mid2, W_out, b_out)

    # Inverse of the (c, j, s, b) row permutation -> batch-major (E, B, T, D).
    out = (out_k.reshape(E, nC, L, S, B, D)
                 .transpose(0, 4, 1, 3, 2, 5)            # (E, B, nC, S, L, D)
                 .reshape(E, B, T, D))
    hidden = hid_k.reshape(E * B, 2 * D)[None]           # (1, E*B, 2D)
    return out, hidden


# ---------------------------- pure-JAX reference ----------------------------
def _scan_gilr_ref(v, f):
    # v, f: (N, T, D);  h_t = f_t*h_{t-1} + (1-f_t)*v_t, h_0 = 0
    def step(h, vf):
        vt, ft = vf
        h = ft * h + (1.0 - ft) * vt
        return h, h
    h0 = jnp.zeros((v.shape[0], v.shape[2]), v.dtype)
    hT, ys = lax.scan(step, h0, (jnp.swapaxes(v, 0, 1), jnp.swapaxes(f, 0, 1)))
    return jnp.swapaxes(ys, 0, 1), hT


def _mlin_ref(x, W, b):
    # x: (E,B,T,in), W: (E,in,out), b: (E,1,out)
    return jnp.einsum("ebti,eio->ebto", x, W) + b[:, None]


def egilr_lstm_reference(x, p):
    E, B, T, _ = x.shape
    D = p["W_out"].shape[-1]
    v = jnp.tanh(_mlin_ref(x, p["W_in"][:, 0], p["b_in"][:, 0]))
    f = jax.nn.sigmoid(_mlin_ref(x, p["W_in"][:, 1], p["b_in"][:, 1]))
    s1, h1 = _scan_gilr_ref(v.reshape(E * B, T, D), f.reshape(E * B, T, D))
    v2 = s1.reshape(E, B, T, D)
    f2 = jax.nn.sigmoid(_mlin_ref(v2, p["W_mid"][:, 0], p["b_mid"][:, 0]))
    i2 = jax.nn.sigmoid(_mlin_ref(v2, p["W_mid"][:, 1], p["b_mid"][:, 1]))
    o2 = jax.nn.sigmoid(_mlin_ref(v2, p["W_mid"][:, 2], p["b_mid"][:, 2]))
    z2 = jnp.tanh(_mlin_ref(v2, p["W_mid"][:, 3], p["b_mid"][:, 3]))
    s2, h2 = _scan_gilr_ref((i2 * z2).reshape(E * B, T, D), f2.reshape(E * B, T, D))
    out = (s2 * o2.reshape(E * B, T, D)).reshape(E, B, T, D)
    out = _mlin_ref(out, p["W_out"], p["b_out"])
    hidden = jnp.concatenate([h1, h2], axis=-1)[None]
    return out, hidden


def init_params(key, input_dim, d_model, num_ensemble):
    ks = jax.random.split(key, 6)
    s_in = 1.0 / jnp.sqrt(jnp.float32(input_dim))
    s_d = 1.0 / jnp.sqrt(jnp.float32(d_model))
    E, D, IN = num_ensemble, d_model, input_dim
    return dict(
        W_in=jax.random.uniform(ks[0], (E, 2, IN, D), jnp.float32, -s_in, s_in),
        b_in=jax.random.uniform(ks[1], (E, 2, 1, D), jnp.float32, -s_in, s_in),
        W_mid=jax.random.uniform(ks[2], (E, 4, D, D), jnp.float32, -s_d, s_d),
        b_mid=jax.random.uniform(ks[3], (E, 4, 1, D), jnp.float32, -s_d, s_d),
        W_out=jax.random.uniform(ks[4], (E, D, D), jnp.float32, -s_d, s_d),
        b_out=jax.random.uniform(ks[5], (E, 1, D), jnp.float32, -s_d, s_d),
    )


if __name__ == "__main__":
    E, B, T, IN, D = 3, 2, 8, 16, 32  # num_ensemble, batch, seq, input_dim, output_dim (factor=1)

    key = jax.random.PRNGKey(0)
    kx, kp = jax.random.split(key)
    x = jax.random.normal(kx, (E, B, T, IN), jnp.float32)
    params = init_params(kp, IN, D, E)

    # Quantize test data/weights to bf16-representable values so the bf16 MXU
    # path in the kernel and the f32 reference agree tightly.
    _q = lambda a: a.astype(jnp.bfloat16).astype(jnp.float32)
    x = _q(x)
    params = jax.tree_util.tree_map(_q, params)

    out, hidden = jax.block_until_ready(egilr_lstm_forward(x, params))

    out_ref, hidden_ref = egilr_lstm_reference(x, params)
    assert out.shape == (E, B, T, D) and hidden.shape == (1, E * B, 2 * D)
    # bf16 MXU operand truncation of the intermediate scan states bounds the
    # residual deviation well below 2e-2 at these magnitudes.
    assert jnp.allclose(out, out_ref, rtol=2e-2, atol=2e-2)
    assert jnp.allclose(hidden, hidden_ref, rtol=2e-2, atol=2e-2)

    print("KERNEL_OK")
</pallas_src>

<mosaic_0001>
module attributes {stable_mosaic.version = 11 : i64} {
  func.func @_egilr_kernel(%arg0: i32, %arg1: i32, %arg2: memref<1x16x16xbf16, #tpu.memory_space<vmem>>, %arg3: memref<1x16x64xbf16, #tpu.memory_space<vmem>>, %arg4: memref<1x1x64xf32, #tpu.memory_space<vmem>>, %arg5: memref<1x32x128xbf16, #tpu.memory_space<vmem>>, %arg6: memref<1x1x128xf32, #tpu.memory_space<vmem>>, %arg7: memref<1x32x32xbf16, #tpu.memory_space<vmem>>, %arg8: memref<1x1x32xf32, #tpu.memory_space<vmem>>, %arg9: memref<1x16x32xf32, #tpu.memory_space<vmem>>, %arg10: memref<1x2x64xf32, #tpu.memory_space<vmem>>, %arg11: memref<16x32xf32, #tpu.memory_space<vmem>>, %arg12: memref<16x32xf32, #tpu.memory_space<vmem>>, %arg13: memref<16x32xf32, #tpu.memory_space<vmem>>, %arg14: memref<16x32xf32, #tpu.memory_space<vmem>>, %arg15: memref<2x32xf32, #tpu.memory_space<vmem>>, %arg16: memref<2x32xf32, #tpu.memory_space<vmem>>) attributes {dimension_semantics = [#tpu.dimension_semantics<parallel>, #tpu.dimension_semantics<arbitrary>], iteration_bounds = array<i64: 3, 1>, scalar_prefetch = 0 : i64, scratch_operands = 6 : i64, tpu.core_type = #tpu.core_type<tc>, window_params = [{transform_indices = @transform_0, window_bounds = array<i64: 1, 16, 16>}, {transform_indices = @transform_1, window_bounds = array<i64: 1, 16, 64>}, {transform_indices = @transform_2, window_bounds = array<i64: 1, 1, 64>}, {transform_indices = @transform_3, window_bounds = array<i64: 1, 32, 128>}, {transform_indices = @transform_4, window_bounds = array<i64: 1, 1, 128>}, {transform_indices = @transform_5, window_bounds = array<i64: 1, 32, 32>}, {transform_indices = @transform_6, window_bounds = array<i64: 1, 1, 32>}, {transform_indices = @transform_7, window_bounds = array<i64: 1, 16, 32>}, {transform_indices = @transform_8, window_bounds = array<i64: 1, 2, 64>}]} {
    %c0_i32 = arith.constant 0 : i32
    %0 = arith.cmpi eq, %arg1, %c0_i32 : i32
    %1 = arith.extui %0 : i1 to i32
    %c0_i32_0 = arith.constant 0 : i32
    %2 = arith.cmpi ne, %1, %c0_i32_0 : i32
    scf.if %2 {
      %cst_95 = arith.constant 0.000000e+00 : f32
      %198 = vector.broadcast %cst_95 : f32 to vector<2x32xf32>
      %c0_96 = arith.constant 0 : index
      %c0_97 = arith.constant 0 : index
      %199 = vector.load %arg15[%c0_96, %c0_97] : memref<2x32xf32, #tpu.memory_space<vmem>>, vector<2x32xf32>
      tpu.vector_store %arg15[%c0_96, %c0_97], %198 {strides = array<i32>} : memref<2x32xf32, #tpu.memory_space<vmem>>, vector<2x32xf32>,
      %cst_98 = arith.constant 0.000000e+00 : f32
      %200 = vector.broadcast %cst_98 : f32 to vector<2x32xf32>
      %c0_99 = arith.constant 0 : index
      %c0_100 = arith.constant 0 : index
      %201 = vector.load %arg16[%c0_99, %c0_100] : memref<2x32xf32, #tpu.memory_space<vmem>>, vector<2x32xf32>
      tpu.vector_store %arg16[%c0_99, %c0_100], %200 {strides = array<i32>} : memref<2x32xf32, #tpu.memory_space<vmem>>, vector<2x32xf32>,
    } else {
    }
    %c0 = arith.constant 0 : index
    %c0_1 = arith.constant 0 : index
    %c0_2 = arith.constant 0 : index
    %3 = vector.load %arg2[%c0, %c0_1, %c0_2] : memref<1x16x16xbf16, #tpu.memory_space<vmem>>, vector<1x16x16xbf16>
    %4 = vector.shape_cast %3 : vector<1x16x16xbf16> to vector<16x16xbf16>
    %c0_3 = arith.constant 0 : index
    %c0_4 = arith.constant 0 : index
    %c0_5 = arith.constant 0 : index
    %5 = vector.load %arg3[%c0_3, %c0_4, %c0_5] : memref<1x16x64xbf16, #tpu.memory_space<vmem>>, vector<1x16x64xbf16>
    %6 = vector.shape_cast %5 : vector<1x16x64xbf16> to vector<16x64xbf16>
    %cst = arith.constant dense<0.000000e+00> : vector<16x64xf32>
    %7 = tpu.matmul %4, %6, %cst {dimension_numbers = #tpu.dot_dimension_numbers<[1], [0], [0], [1], [0, 0, 1, 1], [], []>} : vector<16x16xbf16>, vector<16x64xbf16>, vector<16x64xf32> -> vector<16x64xf32>
    %c0_6 = arith.constant 0 : index
    %c0_7 = arith.constant 0 : index
    %c0_8 = arith.constant 0 : index
    %8 = vector.load %arg4[%c0_6, %c0_7, %c0_8] : memref<1x1x64xf32, #tpu.memory_space<vmem>>, vector<1x1x64xf32>
    %9 = vector.shape_cast %8 : vector<1x1x64xf32> to vector<1x64xf32>
    %10 = vector.broadcast %9 : vector<1x64xf32> to vector<16x64xf32>
    %11 = arith.addf %7, %10 : vector<16x64xf32>
    %12 = tpu.iota {dimensions = array<i32: 1>} : vector<1x64xi32>
    %c32_i32 = arith.constant 32 : i32
    %13 = vector.broadcast %c32_i32 : i32 to vector<1x64xi32>
    %14 = arith.cmpi slt, %12, %13 : vector<1x64xi32>
    %cst_9 = arith.constant 1.000000e+00 : f32
    %cst_10 = arith.constant 5.000000e-01 : f32
    %15 = vector.broadcast %cst_9 : f32 to vector<1x64xf32>
    %16 = vector.broadcast %cst_10 : f32 to vector<1x64xf32>
    %17 = arith.select %14, %15, %16 : vector<1x64xi1>, vector<1x64xf32>
    %18 = vector.broadcast %17 : vector<1x64xf32> to vector<16x64xf32>
    %19 = arith.mulf %11, %18 : vector<16x64xf32>
    %20 = math.tanh %19 : vector<16x64xf32>
    %21 = vector.extract_strided_slice %20 {offsets = [0, 0], sizes = [16, 32], strides = [1, 1]} : vector<16x64xf32> to vector<16x32xf32>
    %22 = vector.extract_strided_slice %20 {offsets = [0, 32], sizes = [16, 32], strides = [1, 1]} : vector<16x64xf32> to vector<16x32xf32>
    %cst_11 = arith.constant 5.000000e-01 : f32
    %23 = vector.broadcast %cst_11 : f32 to vector<16x32xf32>
    %24 = arith.mulf %23, %22 : vector<16x32xf32>
    %cst_12 = arith.constant 5.000000e-01 : f32
    %25 = vector.broadcast %cst_12 : f32 to vector<16x32xf32>
    %26 = arith.addf %24, %25 : vector<16x32xf32>
    %c0_13 = arith.constant 0 : index
    %c0_14 = arith.constant 0 : index
    %27 = vector.load %arg11[%c0_13, %c0_14] : memref<16x32xf32, #tpu.memory_space<vmem>>, vector<16x32xf32>
    tpu.vector_store %arg11[%c0_13, %c0_14], %26 {strides = array<i32>} : memref<16x32xf32, #tpu.memory_space<vmem>>, vector<16x32xf32>,
    %28 = arith.mulf %26, %21 : vector<16x32xf32>
    %29 = arith.subf %21, %28 : vector<16x32xf32>
    %c0_15 = arith.constant 0 : index
    %c0_16 = arith.constant 0 : index
    %30 = vector.load %arg12[%c0_15, %c0_16] : memref<16x32xf32, #tpu.memory_space<vmem>>, vector<16x32xf32>
    tpu.vector_store %arg12[%c0_15, %c0_16], %29 {strides = array<i32>} : memref<16x32xf32, #tpu.memory_space<vmem>>, vector<16x32xf32>,
    %cst_17 = arith.constant 0.000000e+00 : f32
    %31 = vector.broadcast %cst_17 : f32 to vector<8x32xf32>
    %cst_18 = arith.constant 1.000000e+00 : f32
    %32 = vector.broadcast %cst_18 : f32 to vector<8x32xf32>
    %c0_i32_19 = arith.constant 0 : i32
    %c8_i32 = arith.constant 8 : i32
    %33 = arith.muli %c0_i32_19, %c8_i32 : i32
    %34 = tpu.assume_multiple %33, 8 : i32
    %35 = arith.index_cast %34 : i32 to index
    %c0_20 = arith.constant 0 : index
    %36 = vector.load %arg11[%35, %c0_20] : memref<16x32xf32, #tpu.memory_space<vmem>>, vector<8x32xf32>
    %37 = arith.mulf %36, %31 : vector<8x32xf32>
    %38 = arith.index_cast %34 : i32 to index
    %c0_21 = arith.constant 0 : index
    %39 = vector.load %arg12[%38, %c0_21] : memref<16x32xf32, #tpu.memory_space<vmem>>, vector<8x32xf32>
    %40 = arith.addf %37, %39 : vector<8x32xf32>
    %41 = arith.mulf %32, %36 : vector<8x32xf32>
    %42 = arith.index_cast %34 : i32 to index
    %c0_22 = arith.constant 0 : index
    %43 = vector.load %arg12[%42, %c0_22] : memref<16x32xf32, #tpu.memory_space<vmem>>, vector<8x32xf32>
    tpu.vector_store %arg12[%42, %c0_22], %40 {strides = array<i32>} : memref<16x32xf32, #tpu.memory_space<vmem>>, vector<8x32xf32>,
    %44 = arith.index_cast %34 : i32 to index
    %c0_23 = arith.constant 0 : index
    %45 = vector.load %arg13[%44, %c0_23] : memref<16x32xf32, #tpu.memory_space<vmem>>, vector<8x32xf32>
    tpu.vector_store %arg13[%44, %c0_23], %41 {strides = array<i32>} : memref<16x32xf32, #tpu.memory_space<vmem>>, vector<8x32xf32>,
    %c1_i32 = arith.constant 1 : i32
    %c8_i32_24 = arith.constant 8 : i32
    %46 = arith.muli %c1_i32, %c8_i32_24 : i32
    %47 = tpu.assume_multiple %46, 8 : i32
    %48 = arith.index_cast %47 : i32 to index
    %c0_25 = arith.constant 0 : index
    %49 = vector.load %arg11[%48, %c0_25] : memref<16x32xf32, #tpu.memory_space<vmem>>, vector<8x32xf32>
    %50 = arith.mulf %49, %40 : vector<8x32xf32>
    %51 = arith.index_cast %47 : i32 to index
    %c0_26 = arith.constant 0 : index
    %52 = vector.load %arg12[%51, %c0_26] : memref<16x32xf32, #tpu.memory_space<vmem>>, vector<8x32xf32>
    %53 = arith.addf %50, %52 : vector<8x32xf32>
    %54 = arith.mulf %41, %49 : vector<8x32xf32>
    %55 = arith.index_cast %47 : i32 to index
    %c0_27 = arith.constant 0 : index
    %56 = vector.load %arg12[%55, %c0_27] : memref<16x32xf32, #tpu.memory_space<vmem>>, vector<8x32xf32>
    tpu.vector_store %arg12[%55, %c0_27], %53 {strides = array<i32>} : memref<16x32xf32, #tpu.memory_space<vmem>>, vector<8x32xf32>,
    %57 = arith.index_cast %47 : i32 to index
    %c0_28 = arith.constant 0 : index
    %58 = vector.load %arg13[%57, %c0_28] : memref<16x32xf32, #tpu.memory_space<vmem>>, vector<8x32xf32>
    tpu.vector_store %arg13[%57, %c0_28], %54 {strides = array<i32>} : memref<16x32xf32, #tpu.memory_space<vmem>>, vector<8x32xf32>,
    %c2_i32 = arith.constant 2 : i32
    %c0_29 = arith.constant 0 : index
    %c0_30 = arith.constant 0 : index
    %59 = vector.load %arg15[%c0_29, %c0_30] : memref<2x32xf32, #tpu.memory_space<vmem>>, vector<2x32xf32>
    %60 = vector.extract_strided_slice %54 {offsets = [0, 0], sizes = [2, 32], strides = [1, 1]} : vector<8x32xf32> to vector<2x32xf32>
    %61 = arith.mulf %60, %59 : vector<2x32xf32>
    %62 = vector.extract_strided_slice %53 {offsets = [0, 0], sizes = [2, 32], strides = [1, 1]} : vector<8x32xf32> to vector<2x32xf32>
    %63 = arith.addf %61, %62 : vector<2x32xf32>
    %64 = vector.extract_strided_slice %54 {offsets = [2, 0], sizes = [2, 32], strides = [1, 1]} : vector<8x32xf32> to vector<2x32xf32>
    %65 = arith.mulf %64, %63 : vector<2x32xf32>
    %66 = vector.extract_strided_slice %53 {offsets = [2, 0], sizes = [2, 32], strides = [1, 1]} : vector<8x32xf32> to vector<2x32xf32>
    %67 = arith.addf %65, %66 : vector<2x32xf32>
    %68 = vector.extract_strided_slice %54 {offsets = [4, 0], sizes = [2, 32], strides = [1, 1]} : vector<8x32xf32> to vector<2x32xf32>
    %69 = arith.mulf %68, %67 : vector<2x32xf32>
    %70 = vector.extract_strided_slice %53 {offsets = [4, 0], sizes = [2, 32], strides = [1, 1]} : vector<8x32xf32> to vector<2x32xf32>
    %71 = arith.addf %69, %70 : vector<2x32xf32>
    %72 = vector.extract_strided_slice %54 {offsets = [6, 0], sizes = [2, 32], strides = [1, 1]} : vector<8x32xf32> to vector<2x32xf32>
    %73 = arith.mulf %72, %71 : vector<2x32xf32>
    %74 = vector.extract_strided_slice %53 {offsets = [6, 0], sizes = [2, 32], strides = [1, 1]} : vector<8x32xf32> to vector<2x32xf32>
    %75 = arith.addf %73, %74 : vector<2x32xf32>
    %c0_31 = arith.constant 0 : index
    %c0_32 = arith.constant 0 : index
    %76 = vector.load %arg15[%c0_31, %c0_32] : memref<2x32xf32, #tpu.memory_space<vmem>>, vector<2x32xf32>
    tpu.vector_store %arg15[%c0_31, %c0_32], %75 {strides = array<i32>} : memref<2x32xf32, #tpu.memory_space<vmem>>, vector<2x32xf32>,
    %77 = tpu.concatenate %59, %63, %67, %71 in 0 : vector<2x32xf32>, vector<2x32xf32>, vector<2x32xf32>, vector<2x32xf32> -> vector<8x32xf32>
    %c0_33 = arith.constant 0 : index
    %c0_34 = arith.constant 0 : index
    %78 = vector.load %arg12[%c0_33, %c0_34] : memref<16x32xf32, #tpu.memory_space<vmem>>, vector<16x32xf32>
    %79 = vector.shape_cast %78 : vector<16x32xf32> to vector<2x8x32xf32>
    %c0_35 = arith.constant 0 : index
    %c0_36 = arith.constant 0 : index
    %80 = vector.load %arg13[%c0_35, %c0_36] : memref<16x32xf32, #tpu.memory_space<vmem>>, vector<16x32xf32>
    %81 = vector.shape_cast %80 : vector<16x32xf32> to vector<2x8x32xf32>
    %82 = vector.shape_cast %77 : vector<8x32xf32> to vector<1x8x32xf32>
    %83 = vector.broadcast %82 : vector<1x8x32xf32> to vector<2x8x32xf32>
    %84 = arith.mulf %81, %83 : vector<2x8x32xf32>
    %85 = arith.addf %79, %84 : vector<2x8x32xf32>
    %86 = vector.shape_cast %85 : vector<2x8x32xf32> to vector<16x32xf32>
    %87 = arith.truncf %86 : vector<16x32xf32> to vector<16x32xbf16>
    %c0_37 = arith.constant 0 : index
    %c0_38 = arith.constant 0 : index
    %c0_39 = arith.constant 0 : index
    %88 = vector.load %arg5[%c0_37, %c0_38, %c0_39] : memref<1x32x128xbf16, #tpu.memory_space<vmem>>, vector<1x32x128xbf16>
    %89 = vector.shape_cast %88 : vector<1x32x128xbf16> to vector<32x128xbf16>
    %cst_40 = arith.constant dense<0.000000e+00> : vector<16x128xf32>
    %90 = tpu.matmul %87, %89, %cst_40 {dimension_numbers = #tpu.dot_dimension_numbers<[1], [0], [0], [1], [0, 0, 1, 1], [], []>} : vector<16x32xbf16>, vector<32x128xbf16>, vector<16x128xf32> -> vector<16x128xf32>
    %c0_41 = arith.constant 0 : index
    %c0_42 = arith.constant 0 : index
    %c0_43 = arith.constant 0 : index
    %91 = vector.load %arg6[%c0_41, %c0_42, %c0_43] : memref<1x1x128xf32, #tpu.memory_space<vmem>>, vector<1x1x128xf32>
    %92 = vector.shape_cast %91 : vector<1x1x128xf32> to vector<1x128xf32>
    %93 = vector.broadcast %92 : vector<1x128xf32> to vector<16x128xf32>
    %94 = arith.addf %90, %93 : vector<16x128xf32>
    %95 = tpu.iota {dimensions = array<i32: 1>} : vector<1x128xi32>
    %c96_i32 = arith.constant 96 : i32
    %96 = vector.broadcast %c96_i32 : i32 to vector<1x128xi32>
    %97 = arith.cmpi slt, %95, %96 : vector<1x128xi32>
    %cst_44 = arith.constant 5.000000e-01 : f32
    %cst_45 = arith.constant 1.000000e+00 : f32
    %98 = vector.broadcast %cst_44 : f32 to vector<1x128xf32>
    %99 = vector.broadcast %cst_45 : f32 to vector<1x128xf32>
    %100 = arith.select %97, %98, %99 : vector<1x128xi1>, vector<1x128xf32>
    %101 = vector.broadcast %100 : vector<1x128xf32> to vector<16x128xf32>
    %102 = arith.mulf %94, %101 : vector<16x128xf32>
    %103 = math.tanh %102 : vector<16x128xf32>
    %104 = vector.extract_strided_slice %103 {offsets = [0, 0], sizes = [16, 32], strides = [1, 1]} : vector<16x128xf32> to vector<16x32xf32>
    %cst_46 = arith.constant 5.000000e-01 : f32
    %105 = vector.broadcast %cst_46 : f32 to vector<16x32xf32>
    %106 = arith.mulf %105, %104 : vector<16x32xf32>
    %cst_47 = arith.constant 5.000000e-01 : f32
    %107 = vector.broadcast %cst_47 : f32 to vector<16x32xf32>
    %108 = arith.addf %106, %107 : vector<16x32xf32>
    %109 = vector.extract_strided_slice %103 {offsets = [0, 32], sizes = [16, 32], strides = [1, 1]} : vector<16x128xf32> to vector<16x32xf32>
    %cst_48 = arith.constant 5.000000e-01 : f32
    %110 = vector.broadcast %cst_48 : f32 to vector<16x32xf32>
    %111 = arith.mulf %110, %109 : vector<16x32xf32>
    %cst_49 = arith.constant 5.000000e-01 : f32
    %112 = vector.broadcast %cst_49 : f32 to vector<16x32xf32>
    %113 = arith.addf %111, %112 : vector<16x32xf32>
    %114 = vector.extract_strided_slice %103 {offsets = [0, 64], sizes = [16, 32], strides = [1, 1]} : vector<16x128xf32> to vector<16x32xf32>
    %cst_50 = arith.constant 5.000000e-01 : f32
    %115 = vector.broadcast %cst_50 : f32 to vector<16x32xf32>
    %116 = arith.mulf %115, %114 : vector<16x32xf32>
    %cst_51 = arith.constant 5.000000e-01 : f32
    %117 = vector.broadcast %cst_51 : f32 to vector<16x32xf32>
    %118 = arith.addf %116, %117 : vector<16x32xf32>
    %119 = vector.extract_strided_slice %103 {offsets = [0, 96], sizes = [16, 32], strides = [1, 1]} : vector<16x128xf32> to vector<16x32xf32>
    %120 = arith.mulf %113, %119 : vector<16x32xf32>
    %c0_52 = arith.constant 0 : index
    %c0_53 = arith.constant 0 : index
    %121 = vector.load %arg11[%c0_52, %c0_53] : memref<16x32xf32, #tpu.memory_space<vmem>>, vector<16x32xf32>
    tpu.vector_store %arg11[%c0_52, %c0_53], %108 {strides = array<i32>} : memref<16x32xf32, #tpu.memory_space<vmem>>, vector<16x32xf32>,
    %c0_54 = arith.constant 0 : index
    %c0_55 = arith.constant 0 : index
    %122 = vector.load %arg14[%c0_54, %c0_55] : memref<16x32xf32, #tpu.memory_space<vmem>>, vector<16x32xf32>
    tpu.vector_store %arg14[%c0_54, %c0_55], %118 {strides = array<i32>} : memref<16x32xf32, #tpu.memory_space<vmem>>, vector<16x32xf32>,
    %123 = arith.mulf %108, %120 : vector<16x32xf32>
    %124 = arith.subf %120, %123 : vector<16x32xf32>
    %c0_56 = arith.constant 0 : index
    %c0_57 = arith.constant 0 : index
    %125 = vector.load %arg12[%c0_56, %c0_57] : memref<16x32xf32, #tpu.memory_space<vmem>>, vector<16x32xf32>
    tpu.vector_store %arg12[%c0_56, %c0_57], %124 {strides = array<i32>} : memref<16x32xf32, #tpu.memory_space<vmem>>, vector<16x32xf32>,
    %cst_58 = arith.constant 0.000000e+00 : f32
    %126 = vector.broadcast %cst_58 : f32 to vector<8x32xf32>
    %cst_59 = arith.constant 1.000000e+00 : f32
    %127 = vector.broadcast %cst_59 : f32 to vector<8x32xf32>
    %c0_i32_60 = arith.constant 0 : i32
    %c8_i32_61 = arith.constant 8 : i32
    %128 = arith.muli %c0_i32_60, %c8_i32_61 : i32
    %129 = tpu.assume_multiple %128, 8 : i32
    %130 = arith.index_cast %129 : i32 to index
    %c0_62 = arith.constant 0 : index
    %131 = vector.load %arg11[%130, %c0_62] : memref<16x32xf32, #tpu.memory_space<vmem>>, vector<8x32xf32>
    %132 = arith.mulf %131, %126 : vector<8x32xf32>
    %133 = arith.index_cast %129 : i32 to index
    %c0_63 = arith.constant 0 : index
    %134 = vector.load %arg12[%133, %c0_63] : memref<16x32xf32, #tpu.memory_space<vmem>>, vector<8x32xf32>
    %135 = arith.addf %132, %134 : vector<8x32xf32>
    %136 = arith.mulf %127, %131 : vector<8x32xf32>
    %137 = arith.index_cast %129 : i32 to index
    %c0_64 = arith.constant 0 : index
    %138 = vector.load %arg12[%137, %c0_64] : memref<16x32xf32, #tpu.memory_space<vmem>>, vector<8x32xf32>
    tpu.vector_store %arg12[%137, %c0_64], %135 {strides = array<i32>} : memref<16x32xf32, #tpu.memory_space<vmem>>, vector<8x32xf32>,
    %139 = arith.index_cast %129 : i32 to index
    %c0_65 = arith.constant 0 : index
    %140 = vector.load %arg13[%139, %c0_65] : memref<16x32xf32, #tpu.memory_space<vmem>>, vector<8x32xf32>
    tpu.vector_store %arg13[%139, %c0_65], %136 {strides = array<i32>} : memref<16x32xf32, #tpu.memory_space<vmem>>, vector<8x32xf32>,
    %c1_i32_66 = arith.constant 1 : i32
    %c8_i32_67 = arith.constant 8 : i32
    %141 = arith.muli %c1_i32_66, %c8_i32_67 : i32
    %142 = tpu.assume_multiple %141, 8 : i32
    %143 = arith.index_cast %142 : i32 to index
    %c0_68 = arith.constant 0 : index
    %144 = vector.load %arg11[%143, %c0_68] : memref<16x32xf32, #tpu.memory_space<vmem>>, vector<8x32xf32>
    %145 = arith.mulf %144, %135 : vector<8x32xf32>
    %146 = arith.index_cast %142 : i32 to index
    %c0_69 = arith.constant 0 : index
    %147 = vector.load %arg12[%146, %c0_69] : memref<16x32xf32, #tpu.memory_space<vmem>>, vector<8x32xf32>
    %148 = arith.addf %145, %147 : vector<8x32xf32>
    %149 = arith.mulf %136, %144 : vector<8x32xf32>
    %150 = arith.index_cast %142 : i32 to index
    %c0_70 = arith.constant 0 : index
    %151 = vector.load %arg12[%150, %c0_70] : memref<16x32xf32, #tpu.memory_space<vmem>>, vector<8x32xf32>
    tpu.vector_store %arg12[%150, %c0_70], %148 {strides = array<i32>} : memref<16x32xf32, #tpu.memory_space<vmem>>, vector<8x32xf32>,
    %152 = arith.index_cast %142 : i32 to index
    %c0_71 = arith.constant 0 : index
    %153 = vector.load %arg13[%152, %c0_71] : memref<16x32xf32, #tpu.memory_space<vmem>>, vector<8x32xf32>
    tpu.vector_store %arg13[%152, %c0_71], %149 {strides = array<i32>} : memref<16x32xf32, #tpu.memory_space<vmem>>, vector<8x32xf32>,
    %c2_i32_72 = arith.constant 2 : i32
    %c0_73 = arith.constant 0 : index
    %c0_74 = arith.constant 0 : index
    %154 = vector.load %arg16[%c0_73, %c0_74] : memref<2x32xf32, #tpu.memory_space<vmem>>, vector<2x32xf32>
    %155 = vector.extract_strided_slice %149 {offsets = [0, 0], sizes = [2, 32], strides = [1, 1]} : vector<8x32xf32> to vector<2x32xf32>
    %156 = arith.mulf %155, %154 : vector<2x32xf32>
    %157 = vector.extract_strided_slice %148 {offsets = [0, 0], sizes = [2, 32], strides = [1, 1]} : vector<8x32xf32> to vector<2x32xf32>
    %158 = arith.addf %156, %157 : vector<2x32xf32>
    %159 = vector.extract_strided_slice %149 {offsets = [2, 0], sizes = [2, 32], strides = [1, 1]} : vector<8x32xf32> to vector<2x32xf32>
    %160 = arith.mulf %159, %158 : vector<2x32xf32>
    %161 = vector.extract_strided_slice %148 {offsets = [2, 0], sizes = [2, 32], strides = [1, 1]} : vector<8x32xf32> to vector<2x32xf32>
    %162 = arith.addf %160, %161 : vector<2x32xf32>
    %163 = vector.extract_strided_slice %149 {offsets = [4, 0], sizes = [2, 32], strides = [1, 1]} : vector<8x32xf32> to vector<2x32xf32>
    %164 = arith.mulf %163, %162 : vector<2x32xf32>
    %165 = vector.extract_strided_slice %148 {offsets = [4, 0], sizes = [2, 32], strides = [1, 1]} : vector<8x32xf32> to vector<2x32xf32>
    %166 = arith.addf %164, %165 : vector<2x32xf32>
    %167 = vector.extract_strided_slice %149 {offsets = [6, 0], sizes = [2, 32], strides = [1, 1]} : vector<8x32xf32> to vector<2x32xf32>
    %168 = arith.mulf %167, %166 : vector<2x32xf32>
    %169 = vector.extract_strided_slice %148 {offsets = [6, 0], sizes = [2, 32], strides = [1, 1]} : vector<8x32xf32> to vector<2x32xf32>
    %170 = arith.addf %168, %169 : vector<2x32xf32>
    %c0_75 = arith.constant 0 : index
    %c0_76 = arith.constant 0 : index
    %171 = vector.load %arg16[%c0_75, %c0_76] : memref<2x32xf32, #tpu.memory_space<vmem>>, vector<2x32xf32>
    tpu.vector_store %arg16[%c0_75, %c0_76], %170 {strides = array<i32>} : memref<2x32xf32, #tpu.memory_space<vmem>>, vector<2x32xf32>,
    %172 = tpu.concatenate %154, %158, %162, %166 in 0 : vector<2x32xf32>, vector<2x32xf32>, vector<2x32xf32>, vector<2x32xf32> -> vector<8x32xf32>
    %c0_77 = arith.constant 0 : index
    %c0_78 = arith.constant 0 : index
    %173 = vector.load %arg12[%c0_77, %c0_78] : memref<16x32xf32, #tpu.memory_space<vmem>>, vector<16x32xf32>
    %174 = vector.shape_cast %173 : vector<16x32xf32> to vector<2x8x32xf32>
    %c0_79 = arith.constant 0 : index
    %c0_80 = arith.constant 0 : index
    %175 = vector.load %arg13[%c0_79, %c0_80] : memref<16x32xf32, #tpu.memory_space<vmem>>, vector<16x32xf32>
    %176 = vector.shape_cast %175 : vector<16x32xf32> to vector<2x8x32xf32>
    %177 = vector.shape_cast %172 : vector<8x32xf32> to vector<1x8x32xf32>
    %178 = vector.broadcast %177 : vector<1x8x32xf32> to vector<2x8x32xf32>
    %179 = arith.mulf %176, %178 : vector<2x8x32xf32>
    %180 = arith.addf %174, %179 : vector<2x8x32xf32>
    %181 = vector.shape_cast %180 : vector<2x8x32xf32> to vector<16x32xf32>
    %c0_81 = arith.constant 0 : index
    %c0_82 = arith.constant 0 : index
    %182 = vector.load %arg14[%c0_81, %c0_82] : memref<16x32xf32, #tpu.memory_space<vmem>>, vector<16x32xf32>
    %183 = arith.mulf %181, %182 : vector<16x32xf32>
    %184 = arith.truncf %183 : vector<16x32xf32> to vector<16x32xbf16>
    %c0_83 = arith.constant 0 : index
    %c0_84 = arith.constant 0 : index
    %c0_85 = arith.constant 0 : index
    %185 = vector.load %arg7[%c0_83, %c0_84, %c0_85] : memref<1x32x32xbf16, #tpu.memory_space<vmem>>, vector<1x32x32xbf16>
    %186 = vector.shape_cast %185 : vector<1x32x32xbf16> to vector<32x32xbf16>
    %cst_86 = arith.constant dense<0.000000e+00> : vector<16x32xf32>
    %187 = tpu.matmul %184, %186, %cst_86 {dimension_numbers = #tpu.dot_dimension_numbers<[1], [0], [0], [1], [0, 0, 1, 1], [], []>} : vector<16x32xbf16>, vector<32x32xbf16>, vector<16x32xf32> -> vector<16x32xf32>
    %c0_87 = arith.constant 0 : index
    %c0_88 = arith.constant 0 : index
    %c0_89 = arith.constant 0 : index
    %188 = vector.load %arg8[%c0_87, %c0_88, %c0_89] : memref<1x1x32xf32, #tpu.memory_space<vmem>>, vector<1x1x32xf32>
    %189 = vector.shape_cast %188 : vector<1x1x32xf32> to vector<1x32xf32>
    %190 = vector.broadcast %189 : vector<1x32xf32> to vector<16x32xf32>
    %191 = arith.addf %187, %190 : vector<16x32xf32>
    %c0_90 = arith.constant 0 : index
    %c0_91 = arith.constant 0 : index
    %c0_92 = arith.constant 0 : index
    %192 = vector.load %arg9[%c0_90, %c0_91, %c0_92] : memref<1x16x32xf32, #tpu.memory_space<vmem>>, vector<1x16x32xf32>
    %193 = vector.shape_cast %192 : vector<1x16x32xf32> to vector<16x32xf32>
    %194 = vector.shape_cast %191 : vector<16x32xf32> to vector<1x16x32xf32>
    tpu.vector_store %arg9[%c0_90, %c0_91, %c0_92], %194 {strides = array<i32>} : memref<1x16x32xf32, #tpu.memory_space<vmem>>, vector<1x16x32xf32>,
    %c0_i32_93 = arith.constant 0 : i32
    %195 = arith.cmpi eq, %arg1, %c0_i32_93 : i32
    %196 = arith.extui %195 : i1 to i32
    %c0_i32_94 = arith.constant 0 : i32
    %197 = arith.cmpi ne, %196, %c0_i32_94 : i32
    scf.if %197 {
      %c0_95 = arith.constant 0 : index
      %c0_96 = arith.constant 0 : index
      %198 = vector.load %arg15[%c0_95, %c0_96] : memref<2x32xf32, #tpu.memory_space<vmem>>, vector<2x32xf32>
      %c0_97 = arith.constant 0 : index
      %c0_98 = arith.constant 0 : index
      %c0_99 = arith.constant 0 : index
      %199 = vector.load %arg10[%c0_97, %c0_98, %c0_99] : memref<1x2x64xf32, #tpu.memory_space<vmem>>, vector<1x2x32xf32>
      %200 = vector.shape_cast %199 : vector<1x2x32xf32> to vector<2x32xf32>
      %201 = vector.shape_cast %198 : vector<2x32xf32> to vector<1x2x32xf32>
      tpu.vector_store %arg10[%c0_97, %c0_98, %c0_99], %201 {strides = array<i32>} : memref<1x2x64xf32, #tpu.memory_space<vmem>>, vector<1x2x32xf32>,
      %c0_100 = arith.constant 0 : index
      %c0_101 = arith.constant 0 : index
      %202 = vector.load %arg16[%c0_100, %c0_101] : memref<2x32xf32, #tpu.memory_space<vmem>>, vector<2x32xf32>
      %c0_102 = arith.constant 0 : index
      %c0_103 = arith.constant 0 : index
      %c32 = arith.constant 32 : index
      %203 = vector.load %arg10[%c0_102, %c0_103, %c32] : memref<1x2x64xf32, #tpu.memory_space<vmem>>, vector<1x2x32xf32>
      %204 = vector.shape_cast %203 : vector<1x2x32xf32> to vector<2x32xf32>
      %205 = vector.shape_cast %202 : vector<2x32xf32> to vector<1x2x32xf32>
      tpu.vector_store %arg10[%c0_102, %c0_103, %c32], %205 {strides = array<i32>} : memref<1x2x64xf32, #tpu.memory_space<vmem>>, vector<1x2x32xf32>,
    } else {
    }
    return
  }
  func.func @transform_0(%arg0: i32, %arg1: i32) -> (i32, i32, i32) {
    %c0_i32 = arith.constant 0 : i32
    %c0_i32_0 = arith.constant 0 : i32
    return %arg0, %arg1, %c0_i32 : i32, i32, i32
  }
  func.func @transform_1(%arg0: i32, %arg1: i32) -> (i32, i32, i32) {
    %c0_i32 = arith.constant 0 : i32
    %c0_i32_0 = arith.constant 0 : i32
    %c0_i32_1 = arith.constant 0 : i32
    return %arg0, %c0_i32, %c0_i32_0 : i32, i32, i32
  }
  func.func @transform_2(%arg0: i32, %arg1: i32) -> (i32, i32, i32) {
    %c0_i32 = arith.constant 0 : i32
    %c0_i32_0 = arith.constant 0 : i32
    %c0_i32_1 = arith.constant 0 : i32
    return %arg0, %c0_i32, %c0_i32_0 : i32, i32, i32
  }
  func.func @transform_3(%arg0: i32, %arg1: i32) -> (i32, i32, i32) {
    %c0_i32 = arith.constant 0 : i32
    %c0_i32_0 = arith.constant 0 : i32
    %c0_i32_1 = arith.constant 0 : i32
    return %arg0, %c0_i32, %c0_i32_0 : i32, i32, i32
  }
  func.func @transform_4(%arg0: i32, %arg1: i32) -> (i32, i32, i32) {
    %c0_i32 = arith.constant 0 : i32
    %c0_i32_0 = arith.constant 0 : i32
    %c0_i32_1 = arith.constant 0 : i32
    return %arg0, %c0_i32, %c0_i32_0 : i32, i32, i32
  }
  func.func @transform_5(%arg0: i32, %arg1: i32) -> (i32, i32, i32) {
    %c0_i32 = arith.constant 0 : i32
    %c0_i32_0 = arith.constant 0 : i32
    %c0_i32_1 = arith.constant 0 : i32
    return %arg0, %c0_i32, %c0_i32_0 : i32, i32, i32
  }
  func.func @transform_6(%arg0: i32, %arg1: i32) -> (i32, i32, i32) {
    %c0_i32 = arith.constant 0 : i32
    %c0_i32_0 = arith.constant 0 : i32
    %c0_i32_1 = arith.constant 0 : i32
    return %arg0, %c0_i32, %c0_i32_0 : i32, i32, i32
  }
  func.func @transform_7(%arg0: i32, %arg1: i32) -> (i32, i32, i32) {
    %c0_i32 = arith.constant 0 : i32
    %c0_i32_0 = arith.constant 0 : i32
    return %arg0, %arg1, %c0_i32 : i32, i32, i32
  }
  func.func @transform_8(%arg0: i32, %arg1: i32) -> (i32, i32, i32) {
    %c0_i32 = arith.constant 0 : i32
    %c0_i32_0 = arith.constant 0 : i32
    %c0_i32_1 = arith.constant 0 : i32
    return %arg0, %c0_i32, %c0_i32_0 : i32, i32, i32
  }
}

</mosaic_0001>

<llo_original>
// kernel: egilr_lstm_forward.1
$region0: #{egilr_lstm_forward.1}
  #allocation0 [shape = 'u32[]', space=smem, size = 0x4, offset = 0x4, fixed_abs, tag = 'smem constant byte address 0x4 - core index']
  #allocation1 [shape = 'u32[144,128]{1,0:T(1,128)}', space=vmem, size = 0x12000, scoped, tag = 'internal scratch']
  #allocation2 [shape = 'f32[16,32]{1,0:T(8,128)}', space=vmem, size = 0x2000, scoped, tag = 'scratch operand']
  #allocation3 [shape = 'f32[16,32]{1,0:T(8,128)}', space=vmem, size = 0x2000, scoped, tag = 'scratch operand']
  #allocation4 [shape = 'f32[16,32]{1,0:T(8,128)}', space=vmem, size = 0x2000, scoped, tag = 'scratch operand']
  #allocation5 [shape = 'f32[16,32]{1,0:T(8,128)}', space=vmem, size = 0x2000, scoped, tag = 'scratch operand']
  #allocation6 [shape = 'f32[2,32]{1,0:T(2,128)}', space=vmem, size = 0x400, scoped, tag = 'scratch operand']
  #allocation7 [shape = 'f32[2,32]{1,0:T(2,128)}', space=vmem, size = 0x400, scoped, tag = 'scratch operand']
  %s0 = inlined_call_operand.vmem [shape: bf16[3,16,16], index: 0, kind: input, shape index: {}]
  %s1 = inlined_call_operand.vmem [shape: bf16[3,16,64], index: 1, kind: input, shape index: {}]
  %s2 = inlined_call_operand.vmem [shape: f32[3,1,64], index: 2, kind: input, shape index: {}]
  %s3 = inlined_call_operand.vmem [shape: bf16[3,32,128], index: 3, kind: input, shape index: {}]
  %s4 = inlined_call_operand.vmem [shape: f32[3,1,128], index: 4, kind: input, shape index: {}]
  %s5 = inlined_call_operand.vmem [shape: bf16[3,32,32], index: 5, kind: input, shape index: {}]
  %s6 = inlined_call_operand.vmem [shape: f32[3,1,32], index: 6, kind: input, shape index: {}]
  %s7 = inlined_call_operand.vmem [shape: f32[3,16,32], index: 7, kind: output, shape index: {0}]
  %s8 = inlined_call_operand.hbm [shape: f32[3,2,64], index: 8, kind: output, shape index: {1}]
  %9 = xla_tuple %s7, %s8
  %s10 = sld [smem:[#allocation0]]
  $region77: #{egilr_lstm_forward.1} parent=0
    _
  %s12 = ssub.s32 1, %s10
  %s13 = scalar_select 0, %s12, %s10
  $region1: #{egilr_lstm_forward.1} parent=0
    #allocation8 [shape = 'u8[2048]{0}', space=vmem, size = 0x800, scoped, tag = 'output window, operand 1']
    #allocation9 [shape = 's32[2]{0}', space=sflag, size = 0x8, scoped, tag = 'scoped memory for egilr_lstm_forward.1']
    %14 = vsyncpa [#allocation9], 0
    %s15 = scalar_lea.sflag [#allocation9], 1
    %16 = vsyncpa %s15, 0
    loop: start=0, step=1, limit=5
    $region2: #{egilr_lstm_forward.1} parent=1 // loop_pre_header
      _
    $region3: #{egilr_lstm_forward.1} parent=1 // loop_header
      %s18 = sphi 0, %s22
      %p19 = scmp.ge.s32.totalorder %s18, 5
      %s25 = sphi 0, %s37
      %s26 = sphi 0, %s33
      %s27 = sphi 0, %s25
      %s28 = sphi 0, %s26
      %s29 = sphi 0, %s27
      %s30 = sphi 0, %s28
      %s42 = sphi 0, %s44
      %s45 = sphi 0, %s42
      %s46 = sphi 0, %s45
      %s62 = sphi 0, %s46
      %s68 = sphi 0, %s70
      %s71 = sphi 0, %s68
      %s72 = sphi 0, %s71
      %s88 = sphi 0, %s72
      %s94 = sphi 0, %s96
      %s97 = sphi 0, %s94
      %s98 = sphi 0, %s97
      %s114 = sphi 0, %s98
      %s120 = sphi 0, %s122
      %s123 = sphi 0, %s120
      %s124 = sphi 0, %s123
      %s140 = sphi 0, %s124
      %s146 = sphi 0, %s148
      %s149 = sphi 0, %s146
      %s150 = sphi 0, %s149
      %s166 = sphi 0, %s150
      %s172 = sphi 0, %s174
      %s175 = sphi 0, %s172
      %s176 = sphi 0, %s175
      %s192 = sphi 0, %s176
      %s198 = sphi 0, %s200
      %s201 = sphi 0, %s198
      %s202 = sphi 0, %s201
      %s218 = sphi 0, %s202
      %s226 = sphi 0, %s228
      %s229 = sphi 0, %s226
      %s230 = sphi 0, %s229
      %s246 = sphi 0, %s230
      %s252 = sphi 0, %s254
      %s255 = sphi 0, %s252
      %s256 = sphi 0, %s255
      %s272 = sphi 0, %s256
    $region4: #{egilr_lstm_forward.1} parent=1 // loop_header_branch
      %21 = sbr.rel (%p19) target = $region8
    $region5: #{egilr_lstm_forward.1} parent=1 // loop_body
      %s23 = ssub.s32 %s18, 1
      %s24 = ssub.s32 %s18, 2
      %s31 = sadd.s32 1, %s26
      %p32 = scmp.ge.s32.totalorder %s31, 1
      %s33 = scalar_select %p32, 0, %s31
      %s34 = sadd.s32 1, %s25
      %s35 = scalar_select %p32, %s34, %s25
      %p36 = scmp.ge.s32.totalorder %s35, 3
      %s37 = scalar_select %p36, 0, %s35
      %s38 = ssub.s32 %s25, %s37
      %s39 = ssub.s32 %s26, %s33
      %s40 = sor.u32 %s38, %s39
      %p41 = scmp.eq.s32.totalorder %s40, 0
      %s43 = sadd.s32 %s42, 1
      %s44 = scalar_select %p41, %s42, %s43
      %p47 = pneg %p41
      %p48 = scmp.eq.s32.totalorder %s18, 2
      %p49 = por %p47, %p48
      %p50 = scmp.ne.s32.totalorder %s42, %s45
      %p51 = scmp.eq.s32.totalorder %s18, 0
      %p52 = por %p50, %p51
      %p53 = scmp.ne.s32.totalorder %s42, %s45
      %p54 = scmp.eq.s32.totalorder %s23, 2
      %p55 = por %p53, %p54
      %p56 = scmp.ne.s32.totalorder %s45, %s46
      %p57 = scmp.eq.s32.totalorder %s23, 0
      %p58 = por %p56, %p57
      %p59 = scmp.ne.s32.totalorder %s45, %s46
      %p60 = scmp.eq.s32.totalorder %s24, 2
      %p61 = por %p59, %p60
      %p63 = scmp.ne.s32.totalorder %s46, %s62
      %p64 = scmp.eq.s32.totalorder %s24, 0
      %p65 = por %p63, %p64
      %s66 = ssub.s32 %s25, %s37
      %p67 = scmp.eq.s32.totalorder %s66, 0
      %s69 = sadd.s32 %s68, 1
      %s70 = scalar_select %p67, %s68, %s69
      %p73 = pneg %p67
      %p74 = scmp.eq.s32.totalorder %s18, 2
      %p75 = por %p73, %p74
      %p76 = scmp.ne.s32.totalorder %s68, %s71
      %p77 = scmp.eq.s32.totalorder %s18, 0
      %p78 = por %p76, %p77
      %p79 = scmp.ne.s32.totalorder %s68, %s71
      %p80 = scmp.eq.s32.totalorder %s23, 2
      %p81 = por %p79, %p80
      %p82 = scmp.ne.s32.totalorder %s71, %s72
      %p83 = scmp.eq.s32.totalorder %s23, 0
      %p84 = por %p82, %p83
      %p85 = scmp.ne.s32.totalorder %s71, %s72
      %p86 = scmp.eq.s32.totalorder %s24, 2
      %p87 = por %p85, %p86
      %p89 = scmp.ne.s32.totalorder %s72, %s88
      %p90 = scmp.eq.s32.totalorder %s24, 0
      %p91 = por %p89, %p90
      %s92 = ssub.s32 %s25, %s37
      %p93 = scmp.eq.s32.totalorder %s92, 0
      %s95 = sadd.s32 %s94, 1
      %s96 = scalar_select %p93, %s94, %s95
      %p99 = pneg %p93
      %p100 = scmp.eq.s32.totalorder %s18, 2
      %p101 = por %p99, %p100
      %p102 = scmp.ne.s32.totalorder %s94, %s97
      %p103 = scmp.eq.s32.totalorder %s18, 0
      %p104 = por %p102, %p103
      %p105 = scmp.ne.s32.totalorder %s94, %s97
      %p106 = scmp.eq.s32.totalorder %s23, 2
      %p107 = por %p105, %p106
      %p108 = scmp.ne.s32.totalorder %s97, %s98
      %p109 = scmp.eq.s32.totalorder %s23, 0
      %p110 = por %p108, %p109
      %p111 = scmp.ne.s32.totalorder %s97, %s98
      %p112 = scmp.eq.s32.totalorder %s24, 2
      %p113 = por %p111, %p112
      %p115 = scmp.ne.s32.totalorder %s98, %s114
      %p116 = scmp.eq.s32.totalorder %s24, 0
      %p117 = por %p115, %p116
      %s118 = ssub.s32 %s25, %s37
      %p119 = scmp.eq.s32.totalorder %s118, 0
      %s121 = sadd.s32 %s120, 1
      %s122 = scalar_select %p119, %s120, %s121
      %p125 = pneg %p119
      %p126 = scmp.eq.s32.totalorder %s18, 2
      %p127 = por %p125, %p126
      %p128 = scmp.ne.s32.totalorder %s120, %s123
      %p129 = scmp.eq.s32.totalorder %s18, 0
      %p130 = por %p128, %p129
      %p131 = scmp.ne.s32.totalorder %s120, %s123
      %p132 = scmp.eq.s32.totalorder %s23, 2
      %p133 = por %p131, %p132
      %p134 = scmp.ne.s32.totalorder %s123, %s124
      %p135 = scmp.eq.s32.totalorder %s23, 0
      %p136 = por %p134, %p135
      %p137 = scmp.ne.s32.totalorder %s123, %s124
      %p138 = scmp.eq.s32.totalorder %s24, 2
      %p139 = por %p137, %p138
      %p141 = scmp.ne.s32.totalorder %s124, %s140
      %p142 = scmp.eq.s32.totalorder %s24, 0
      %p143 = por %p141, %p142
      %s144 = ssub.s32 %s25, %s37
      %p145 = scmp.eq.s32.totalorder %s144, 0
      %s147 = sadd.s32 %s146, 1
      %s148 = scalar_select %p145, %s146, %s147
      %p151 = pneg %p145
      %p152 = scmp.eq.s32.totalorder %s18, 2
      %p153 = por %p151, %p152
      %p154 = scmp.ne.s32.totalorder %s146, %s149
      %p155 = scmp.eq.s32.totalorder %s18, 0
      %p156 = por %p154, %p155
      %p157 = scmp.ne.s32.totalorder %s146, %s149
      %p158 = scmp.eq.s32.totalorder %s23, 2
      %p159 = por %p157, %p158
      %p160 = scmp.ne.s32.totalorder %s149, %s150
      %p161 = scmp.eq.s32.totalorder %s23, 0
      %p162 = por %p160, %p161
      %p163 = scmp.ne.s32.totalorder %s149, %s150
      %p164 = scmp.eq.s32.totalorder %s24, 2
      %p165 = por %p163, %p164
      %p167 = scmp.ne.s32.totalorder %s150, %s166
      %p168 = scmp.eq.s32.totalorder %s24, 0
      %p169 = por %p167, %p168
      %s170 = ssub.s32 %s25, %s37
      %p171 = scmp.eq.s32.totalorder %s170, 0
      %s173 = sadd.s32 %s172, 1
      %s174 = scalar_select %p171, %s172, %s173
      %p177 = pneg %p171
      %p178 = scmp.eq.s32.totalorder %s18, 2
      %p179 = por %p177, %p178
      %p180 = scmp.ne.s32.totalorder %s172, %s175
      %p181 = scmp.eq.s32.totalorder %s18, 0
      %p182 = por %p180, %p181
      %p183 = scmp.ne.s32.totalorder %s172, %s175
      %p184 = scmp.eq.s32.totalorder %s23, 2
      %p185 = por %p183, %p184
      %p186 = scmp.ne.s32.totalorder %s175, %s176
      %p187 = scmp.eq.s32.totalorder %s23, 0
      %p188 = por %p186, %p187
      %p189 = scmp.ne.s32.totalorder %s175, %s176
      %p190 = scmp.eq.s32.totalorder %s24, 2
      %p191 = por %p189, %p190
      %p193 = scmp.ne.s32.totalorder %s176, %s192
      %p194 = scmp.eq.s32.totalorder %s24, 0
      %p195 = por %p193, %p194
      %s196 = ssub.s32 %s25, %s37
      %p197 = scmp.eq.s32.totalorder %s196, 0
      %s199 = sadd.s32 %s198, 1
      %s200 = scalar_select %p197, %s198, %s199
      %p203 = pneg %p197
      %p204 = scmp.eq.s32.totalorder %s18, 2
      %p205 = por %p203, %p204
      %p206 = scmp.ne.s32.totalorder %s198, %s201
      %p207 = scmp.eq.s32.totalorder %s18, 0
      %p208 = por %p206, %p207
      %p209 = scmp.ne.s32.totalorder %s198, %s201
      %p210 = scmp.eq.s32.totalorder %s23, 2
      %p211 = por %p209, %p210
      %p212 = scmp.ne.s32.totalorder %s201, %s202
      %p213 = scmp.eq.s32.totalorder %s23, 0
      %p214 = por %p212, %p213
      %p215 = scmp.ne.s32.totalorder %s201, %s202
      %p216 = scmp.eq.s32.totalorder %s24, 2
      %p217 = por %p215, %p216
      %p219 = scmp.ne.s32.totalorder %s202, %s218
      %p220 = scmp.eq.s32.totalorder %s24, 0
      %p221 = por %p219, %p220
      %s222 = ssub.s32 %s25, %s37
      %s223 = ssub.s32 %s26, %s33
      %s224 = sor.u32 %s222, %s223
      %p225 = scmp.eq.s32.totalorder %s224, 0
      %s227 = sadd.s32 %s226, 1
      %s228 = scalar_select %p225, %s226, %s227
      %p231 = pneg %p225
      %p232 = scmp.eq.s32.totalorder %s18, 2
      %p233 = por %p231, %p232
      %p234 = scmp.ne.s32.totalorder %s226, %s229
      %p235 = scmp.eq.s32.totalorder %s18, 0
      %p236 = por %p234, %p235
      %p237 = scmp.ne.s32.totalorder %s226, %s229
      %p238 = scmp.eq.s32.totalorder %s23, 2
      %p239 = por %p237, %p238
      %p240 = scmp.ne.s32.totalorder %s229, %s230
      %p241 = scmp.eq.s32.totalorder %s23, 0
      %p242 = por %p240, %p241
      %p243 = scmp.ne.s32.totalorder %s229, %s230
      %p244 = scmp.eq.s32.totalorder %s24, 2
      %p245 = por %p243, %p244
      %p247 = scmp.ne.s32.totalorder %s230, %s246
      %p248 = scmp.eq.s32.totalorder %s24, 0
      %p249 = por %p247, %p248
      %s250 = ssub.s32 %s25, %s37
      %p251 = scmp.eq.s32.totalorder %s250, 0
      %s253 = sadd.s32 %s252, 1
      %s254 = scalar_select %p251, %s252, %s253
      %p257 = pneg %p251
      %p258 = scmp.eq.s32.totalorder %s18, 2
      %p259 = por %p257, %p258
      %p260 = scmp.ne.s32.totalorder %s252, %s255
      %p261 = scmp.eq.s32.totalorder %s18, 0
      %p262 = por %p260, %p261
      %p263 = scmp.ne.s32.totalorder %s252, %s255
      %p264 = scmp.eq.s32.totalorder %s23, 2
      %p265 = por %p263, %p264
      %p266 = scmp.ne.s32.totalorder %s255, %s256
      %p267 = scmp.eq.s32.totalorder %s23, 0
      %p268 = por %p266, %p267
      %p269 = scmp.ne.s32.totalorder %s255, %s256
      %p270 = scmp.eq.s32.totalorder %s24, 2
      %p271 = por %p269, %p270
      %p273 = scmp.ne.s32.totalorder %s256, %s272
      %p274 = scmp.eq.s32.totalorder %s24, 0
      %p275 = por %p273, %p274
      %p276 = scmp.le.s32.totalorder 1, %s18
      %p277 = scmp.lt.s32.totalorder %s18, 4
      %p278 = pnand %p276, %p277
      %p279 = pneg %p278
      // Predicated region
      $region9: #{egilr_lstm_forward.1} parent=5 // pred_check
        _
      $region10: #{egilr_lstm_forward.1} parent=5 // pred_check_branch
        %281 = sbr.rel (%p278) target = $region12
      $region11: #{egilr_lstm_forward.1} parent=5 // pred_region
        %s282 = ssub.s32 %s18, 1
      $region12: #{egilr_lstm_forward.1} parent=5 // pred_fallthru
        _
      %p283 = scmp.lt.s32.totalorder %s18, 3
      // Predicated region
      $region13: #{egilr_lstm_forward.1} parent=5 // pred_check
        %p284 = pneg %p283
      $region14: #{egilr_lstm_forward.1} parent=5 // pred_check_branch
        %286 = sbr.rel (%p284) target = $region16
      $region15: #{egilr_lstm_forward.1} parent=5 // pred_region
        // Predicated region
        $region17: #{egilr_lstm_forward.1} parent=15 // pred_check
          %p287 = pneg %p52
        $region18: #{egilr_lstm_forward.1} parent=15 // pred_check_branch
          %289 = sbr.rel (%p287) target = $region20
        $region19: #{egilr_lstm_forward.1} parent=15 // pred_region
          %s290 = smul.u32 2, %s26
          %p291 = scmp.lt.s32.totalorder %s25, 2
          %s292 = scalar_select %p291, %s25, 2
          %p293 = scmp.lt.s32.totalorder %s290, 1
          %s294 = scalar_select %p293, %s290, 1
          %s295 = smul.addr %s292, 2
          %s296 = sadd.s32 %s294, %s295
          %s297 = smul.addr %s296, 4
          %s298 = scalar_lea.vmem %s0, %s297
          %s299 = smul.u32 2, %s26
        $region20: #{egilr_lstm_forward.1} parent=15 // pred_fallthru
          _
        // Predicated region
        $region21: #{egilr_lstm_forward.1} parent=15 // pred_check
          %p300 = pneg %p78
        $region22: #{egilr_lstm_forward.1} parent=15 // pred_check_branch
          %302 = sbr.rel (%p300) target = $region24
        $region23: #{egilr_lstm_forward.1} parent=15 // pred_region
          %p303 = scmp.lt.s32.totalorder %s25, 2
          %s304 = scalar_select %p303, %s25, 2
          %s305 = smul.addr %s304, 2
          %s306 = smul.addr %s305, 4
          %s307 = scalar_lea.vmem %s1, %s306
        $region24: #{egilr_lstm_forward.1} parent=15 // pred_fallthru
          _
        // Predicated region
        $region25: #{egilr_lstm_forward.1} parent=15 // pred_check
          %p308 = pneg %p104
        $region26: #{egilr_lstm_forward.1} parent=15 // pred_check_branch
          %310 = sbr.rel (%p308) target = $region28
        $region27: #{egilr_lstm_forward.1} parent=15 // pred_region
          %p311 = scmp.lt.s32.totalorder %s25, 2
          %s312 = scalar_select %p311, %s25, 2
          %s313 = scalar_lea.vmem %s2, %s312
        $region28: #{egilr_lstm_forward.1} parent=15 // pred_fallthru
          _
        // Predicated region
        $region29: #{egilr_lstm_forward.1} parent=15 // pred_check
          %p314 = pneg %p130
        $region30: #{egilr_lstm_forward.1} parent=15 // pred_check_branch
          %316 = sbr.rel (%p314) target = $region32
        $region31: #{egilr_lstm_forward.1} parent=15 // pred_region
          %p317 = scmp.lt.s32.totalorder %s25, 2
          %s318 = scalar_select %p317, %s25, 2
          %s319 = smul.addr %s318, 4
          %s320 = smul.addr %s319, 4
          %s321 = scalar_lea.vmem %s3, %s320
        $region32: #{egilr_lstm_forward.1} parent=15 // pred_fallthru
          _
        // Predicated region
        $region33: #{egilr_lstm_forward.1} parent=15 // pred_check
          %p322 = pneg %p156
        $region34: #{egilr_lstm_forward.1} parent=15 // pred_check_branch
          %324 = sbr.rel (%p322) target = $region36
        $region35: #{egilr_lstm_forward.1} parent=15 // pred_region
          %p325 = scmp.lt.s32.totalorder %s25, 2
          %s326 = scalar_select %p325, %s25, 2
          %s327 = scalar_lea.vmem %s4, %s326
        $region36: #{egilr_lstm_forward.1} parent=15 // pred_fallthru
          _
        // Predicated region
        $region37: #{egilr_lstm_forward.1} parent=15 // pred_check
          %p328 = pneg %p182
        $region38: #{egilr_lstm_forward.1} parent=15 // pred_check_branch
          %330 = sbr.rel (%p328) target = $region40
        $region39: #{egilr_lstm_forward.1} parent=15 // pred_region
          %p331 = scmp.lt.s32.totalorder %s25, 2
          %s332 = scalar_select %p331, %s25, 2
          %s333 = smul.addr %s332, 4
          %s334 = smul.addr %s333, 4
          %s335 = scalar_lea.vmem %s5, %s334
        $region40: #{egilr_lstm_forward.1} parent=15 // pred_fallthru
          _
        // Predicated region
        $region41: #{egilr_lstm_forward.1} parent=15 // pred_check
          %p336 = pneg %p208
        $region42: #{egilr_lstm_forward.1} parent=15 // pred_check_branch
          %338 = sbr.rel (%p336) target = $region44
        $region43: #{egilr_lstm_forward.1} parent=15 // pred_region
          %p339 = scmp.lt.s32.totalorder %s25, 2
          %s340 = scalar_select %p339, %s25, 2
          %s341 = scalar_lea.vmem %s6, %s340
        $region44: #{egilr_lstm_forward.1} parent=15 // pred_fallthru
          _
      $region16: #{egilr_lstm_forward.1} parent=5 // pred_fallthru
        _
      %p342 = scmp.le.s32.totalorder 1, %s18
      %p343 = scmp.lt.s32.totalorder %s18, 4
      %p344 = pnand %p342, %p343
      %p345 = pneg %p344
      // Predicated region
      $region45: #{egilr_lstm_forward.1} parent=5 // pred_check
        _
      $region46: #{egilr_lstm_forward.1} parent=5 // pred_check_branch
        %347 = sbr.rel (%p344) target = $region48
      $region47: #{egilr_lstm_forward.1} parent=5 // pred_region
        %s348 = ssub.s32 %s18, 1
        %s349 = smul.u32 2, %s28
        %p350 = scmp.lt.s32.totalorder %s27, 2
        %s351 = scalar_select %p350, %s27, 2
        %p352 = scmp.lt.s32.totalorder %s349, 1
        %s353 = scalar_select %p352, %s349, 1
        %s354 = smul.addr %s351, 2
        %s355 = sadd.s32 %s353, %s354
        %s356 = smul.addr %s355, 4
        %s357 = scalar_lea.vmem %s0, %s356
        %p358 = pneg %p58
        %p359 = pneg %p55
        %p360 = scmp.lt.s32.totalorder %s27, 2
        %s361 = scalar_select %p360, %s27, 2
        %s362 = smul.addr %s361, 2
        %s363 = smul.addr %s362, 4
        %s364 = scalar_lea.vmem %s1, %s363
        %p365 = pneg %p84
        %p366 = pneg %p81
        %p367 = scmp.lt.s32.totalorder %s27, 2
        %s368 = scalar_select %p367, %s27, 2
        %s369 = scalar_lea.vmem %s2, %s368
        %p370 = pneg %p110
        %p371 = pneg %p107
        %p372 = scmp.lt.s32.totalorder %s27, 2
        %s373 = scalar_select %p372, %s27, 2
        %s374 = smul.addr %s373, 4
        %s375 = smul.addr %s374, 4
        %s376 = scalar_lea.vmem %s3, %s375
        %p377 = pneg %p136
        %p378 = pneg %p133
        %p379 = scmp.lt.s32.totalorder %s27, 2
        %s380 = scalar_select %p379, %s27, 2
        %s381 = scalar_lea.vmem %s4, %s380
        %p382 = pneg %p162
        %p383 = pneg %p159
        %p384 = scmp.lt.s32.totalorder %s27, 2
        %s385 = scalar_select %p384, %s27, 2
        %s386 = smul.addr %s385, 4
        %s387 = smul.addr %s386, 4
        %s388 = scalar_lea.vmem %s5, %s387
        %p389 = pneg %p188
        %p390 = pneg %p185
        %p391 = scmp.lt.s32.totalorder %s27, 2
        %s392 = scalar_select %p391, %s27, 2
        %s393 = scalar_lea.vmem %s6, %s392
        %p394 = pneg %p214
        %p395 = pneg %p211
        %p396 = pneg %p242
        %p397 = pneg %p239
        %s398 = smul.u32 2, %s28
        %p399 = scmp.lt.s32.totalorder %s27, 2
        %s400 = scalar_select %p399, %s27, 2
        %p401 = scmp.lt.s32.totalorder %s398, 1
        %s402 = scalar_select %p401, %s398, 1
        %s403 = smul.addr %s400, 2
        %s404 = sadd.s32 %s402, %s403
        %s405 = smul.addr %s404, 8
        %s406 = scalar_lea.vmem %s7, %s405
        %p407 = pneg %p268
        %p408 = pneg %p265
        %s409 = sand.u32 %s255, 1
        %s410 = scalar_lea.sflag [#allocation9], %s409
        %s411 = sand.u32 %s255, 1
        %s412 = smul.addr %s411, 2
        %s413 = scalar_lea.vmem [#allocation8], %s412
        %s414 = smul.u32 2, %s28
        %p415 = scmp.lt.s32.totalorder %s27, 2
        %s416 = scalar_select %p415, %s27, 2
        %p417 = scmp.lt.s32.totalorder %s414, 1
        %s418 = scalar_select %p417, %s414, 1
        %s419 = smul.addr %s416, 2
        %s420 = sadd.s32 %s418, %s419
        %s421 = smul.addr %s420, 4
        %s422 = scalar_lea.vmem %s0, %s421
        %s423 = smul.u32 2, %s28
        %p424 = scmp.lt.s32.totalorder %s27, 2
        %s425 = scalar_select %p424, %s27, 2
        %s426 = smul.addr %s425, 2
        %s427 = smul.addr %s426, 4
        %s428 = scalar_lea.vmem %s1, %s427
        %p429 = scmp.lt.s32.totalorder %s27, 2
        %s430 = scalar_select %p429, %s27, 2
        %s431 = scalar_lea.vmem %s2, %s430
        %p432 = scmp.lt.s32.totalorder %s27, 2
        %s433 = scalar_select %p432, %s27, 2
        %s434 = smul.addr %s433, 4
        %s435 = smul.addr %s434, 4
        %s436 = scalar_lea.vmem %s3, %s435
        %p437 = scmp.lt.s32.totalorder %s27, 2
        %s438 = scalar_select %p437, %s27, 2
        %s439 = scalar_lea.vmem %s4, %s438
        %p440 = scmp.lt.s32.totalorder %s27, 2
        %s441 = scalar_select %p440, %s27, 2
        %s442 = smul.addr %s441, 4
        %s443 = smul.addr %s442, 4
        %s444 = scalar_lea.vmem %s5, %s443
        %p445 = scmp.lt.s32.totalorder %s27, 2
        %s446 = scalar_select %p445, %s27, 2
        %s447 = scalar_lea.vmem %s6, %s446
        %s448 = smul.u32 2, %s28
        %p449 = scmp.lt.s32.totalorder %s27, 2
        %s450 = scalar_select %p449, %s27, 2
        %p451 = scmp.lt.s32.totalorder %s448, 1
        %s452 = scalar_select %p451, %s448, 1
        %s453 = smul.addr %s450, 2
        %s454 = sadd.s32 %s452, %s453
        %s455 = smul.addr %s454, 8
        %s456 = scalar_lea.vmem %s7, %s455
        %s457 = smul.u32 2, %s28
        %p459 = scmp.eq.s32.totalorder %s28, 0
        // Predicated region
        $region49: #{egilr_lstm_forward.1} parent=47 // pred_check
          %p460 = pneg %p459
        $region50: #{egilr_lstm_forward.1} parent=47 // pred_check_branch
          %462 = sbr.rel (%p460) target = $region52
        $region51: #{egilr_lstm_forward.1} parent=47 // pred_region
          %vm463 = vcmask 254976
          %464 = vst.msk [vmem:[#allocation6] sm:$0x3] %vm463, 0.0
          %465 = vst.msk [vmem:[#allocation7] sm:$0x3] %vm463, 0.0
        $region52: #{egilr_lstm_forward.1} parent=47 // pred_fallthru
          _
        %v466 = vld [vmem:[%s422] sm:$0xf]
        %v467 = vld [vmem:[%s422 + $0x4] sm:$0xf]
        %v468 = vld [vmem:[%s428] sm:$0xf]
        %v469 = vld [vmem:[%s428 + $0x4] sm:$0xf]
        %v470 = vld [vmem:[%s431] sm:$0x1]
        %v472 = vlaneseq
        %v473 = vshrl.u32 %v472, 7
        %v474 = vsub.s32 0, %v473
        %v475 = vrot.slane %v470, %v474
        %v479 = vunpack.c.l.b16 %v466
        %v480 = vunpack.c.l.b16 %v467
        %v481 = vpack.c.b16 %v480, %v479
        %v484 = vunpack.c.l.b16 %v468
        %v485 = vunpack.c.l.b16 %v469
        %v486 = vpack.c.b16 %v485, %v484
        %vm488 = vcmask 130048
        %v490 = vsel %vm488, %v481, 0
        %492 = vmatprep.subr.bf16.mxu0 0
        %493 = vmatpush1.bf16.msra.mxu0 0
        %494 = vmatprep.subr.bf16.mxu0 0
        %495 = vmatpush1.bf16.msra.mxu0 0
        %496 = vmatprep.subr.bf16.mxu0 0
        %497 = vmatpush1.bf16.msra.mxu0 0
        %498 = vmatprep.subr.bf16.mxu0 0
        %499 = vmatpush1.bf16.msra.mxu0 0
        %500 = vmatprep.subr.bf16.mxu0 0
        %501 = vmatpush1.bf16.msra.mxu0 0
        %502 = vmatprep.subr.bf16.mxu0 0
        %503 = vmatpush1.bf16.msra.mxu0 0
        %504 = vmatprep.subr.bf16.mxu0 0
        %505 = vmatpush1.bf16.msra.mxu0 0
        %506 = vmatprep.subr.bf16.mxu0 0
        %507 = vmatpush1.bf16.msra.mxu0 %v486
        %508 = vmatprep.subr.bf16.mxu0 0
        %509 = vmatpush2.bf16.msra.mxu0 0
        %510 = vmatprep.subr.bf16.mxu0 0
        %511 = vmatpush2.bf16.msra.mxu0 0
        %512 = vmatprep.subr.bf16.mxu0 0
        %513 = vmatpush2.bf16.msra.mxu0 0
        %514 = vmatprep.subr.bf16.mxu0 0
        %515 = vmatpush2.bf16.msra.mxu0 0
        %516 = vmatprep.subr.bf16.mxu0 0
        %517 = vmatpush2.bf16.msra.mxu0 0
        %518 = vmatprep.subr.bf16.mxu0 0
        %519 = vmatpush2.bf16.msra.mxu0 0
        %520 = vmatprep.subr.bf16.mxu0 0
        %521 = vmatpush2.bf16.msra.mxu0 0
        %522 = vmatprep.subr.bf16.mxu0 0
        %523 = vmatpush2.bf16.msra.mxu0 0
        %524 = vmatprep.mubr.bf16.mxu0 0
        %525 = vmatmul.mubr.bf16.gmra.mxu0 %v490
        %v526 = vpop.f32.mrf.mxu0
        %v527 = vadd.f32 %v475, %v526
        %v528 = vpop.f32.mrf.mxu0
        %v529 = vpop.f32.mrf.mxu0
        %v530 = vadd.f32 %v475, %v529
        %v531 = vpop.f32.mrf.mxu0
        %532 = vdwg.mxu0
        %v533 = vlaneseq
        %v534 = vand.u32 %v533, 127
        %vm535 = vcmp.lt.s32.totalorder %v534, 32
        %v536 = vsel %vm535, 1.0, 0.5
        %v537 = vmul.f32 %v527, %v536
        %v538 = vmul.f32 %v530, %v536
        %v539 = vtanh.pop %v537
        %v540 = vtanh.pop %v538
        %v541 = vmul.f32 %v539, 0.5
        %v542 = vmul.f32 %v540, 0.5
        %v543 = vadd.f32 %v541, 0.5
        %v544 = vadd.f32 %v542, 0.5
        %547 = vrot.lane.b32.xlu0 %v543, 96
        %v548 = vpop.permute.xlu0 %547
        %549 = vrot.lane.b32.xlu0 %v544, 96
        %v550 = vpop.permute.xlu0 %549
        %vm553 = vcmask 261120
        %554 = vst.msk [vmem:[#allocation2] sm:$0xff] %vm553, %v548
        %555 = vst.msk [vmem:[#allocation2 + $0x8] sm:$0xff] %vm553, %v550
        %558 = vrot.lane.b32.xlu0 %v539, 32
        %v559 = vpop.permute.xlu0 %558
        %560 = vrot.lane.b32.xlu0 %v540, 32
        %v561 = vpop.permute.xlu0 %560
        %v564 = vmul.f32 %v543, %v559
        %v565 = vmul.f32 %v544, %v561
        %568 = vrot.lane.b32.xlu0 %v564, 96
        %v569 = vpop.permute.xlu0 %568
        %570 = vrot.lane.b32.xlu0 %v565, 96
        %v571 = vpop.permute.xlu0 %570
        %v574 = vsub.f32 %v539, %v569
        %v575 = vsub.f32 %v540, %v571
        %576 = vst.msk [vmem:[#allocation3] sm:$0xff] %vm553, %v574
        %577 = vst.msk [vmem:[#allocation3 + $0x8] sm:$0xff] %vm553, %v575
        %v578 = vld [vmem:[#allocation2] sm:$0xff]
        %v579 = vmul.f32 %v578, 0.0
        %v580 = vld [vmem:[#allocation3] sm:$0xff]
        %v581 = vadd.f32 %v579, %v580
        %582 = vst.msk [vmem:[#allocation3] sm:$0xff] %vm553, %v581
        %583 = vst.msk [vmem:[#allocation4] sm:$0xff] %vm553, %v578
        %s584 = scalar_lea.vmem [#allocation2], 8
        %v585 = vld [vmem:[%s584] sm:$0xff]
        %v586 = vmul.f32 %v585, %v581
        %s587 = scalar_lea.vmem [#allocation3], 8
        %v588 = vld [vmem:[%s587] sm:$0xff]
        %v589 = vadd.f32 %v586, %v588
        %v590 = vmul.f32 %v578, %v585
        %591 = vst.msk [vmem:[%s587] sm:$0xff] %vm553, %v589
        %s592 = scalar_lea.vmem [#allocation4], 8
        %593 = vst.msk [vmem:[%s592] sm:$0xff] %vm553, %v590
        %v594 = vld [vmem:[#allocation6] sm:$0x3]
        %v595 = vmul.f32 %v590, %v594
        %v596 = vadd.f32 %v595, %v589
        %v598 = vrot.slane %v596, 6
        %v600 = vmul.f32 %v590, %v598
        %v601 = vadd.f32 %v600, %v589
        %v603 = vrot.slane %v601, 6
        %v605 = vmul.f32 %v590, %v603
        %v606 = vadd.f32 %v605, %v589
        %v608 = vrot.slane %v606, 6
        %v610 = vmul.f32 %v590, %v608
        %v611 = vadd.f32 %v610, %v589
        %vm612 = vcmask 261126
        %613 = vst.msk [vmem:[#allocation6 - $0x6] sm:$0xc0] %vm612, %v611
        %vm614 = vcmask 1041408
        %v615 = vsel %vm614, %v594, %v598
        %vm616 = vcmask 1043456
        %v617 = vsel %vm616, %v615, %v603
        %vm618 = vcmask 1045504
        %v619 = vsel %vm618, %v617, %v608
        %v620 = vld [vmem:[#allocation3] sm:$0xff]
        %v621 = vld [vmem:[#allocation3 + $0x8] sm:$0xff]
        %v622 = vld [vmem:[#allocation4] sm:$0xff]
        %v623 = vld [vmem:[#allocation4 + $0x8] sm:$0xff]
        %v624 = vmul.f32 %v622, %v619
        %v625 = vmul.f32 %v623, %v619
        %v626 = vadd.f32 %v620, %v624
        %v627 = vadd.f32 %v621, %v625
        %v628 = vpack.c.bf16 %v627, %v626
        %v629 = vld [vmem:[%s436] sm:$0xf]
        %v630 = vld [vmem:[%s436 + $0x4] sm:$0xf]
        %v631 = vld [vmem:[%s436 + $0x8] sm:$0xf]
        %v632 = vld [vmem:[%s436 + $0xc] sm:$0xf]
        %v633 = vld [vmem:[%s439] sm:$0x1]
        %v635 = vlaneseq
        %v636 = vshrl.u32 %v635, 7
        %v637 = vsub.s32 0, %v636
        %v638 = vrot.slane %v633, %v637
        %v644 = vunpack.c.l.b16 %v629
        %v645 = vunpack.c.l.b16 %v630
        %v646 = vunpack.c.l.b16 %v631
        %v647 = vunpack.c.l.b16 %v632
        %v648 = vpack.c.b16 %v645, %v644
        %v649 = vpack.c.b16 %v647, %v646
        %v653 = vsel %vm553, %v628, 0
        %655 = vmatprep.subr.bf16.mxu0 0
        %656 = vmatpush1.bf16.msra.mxu0 0
        %657 = vmatprep.subr.bf16.mxu0 0
        %658 = vmatpush1.bf16.msra.mxu0 0
        %659 = vmatprep.subr.bf16.mxu0 0
        %660 = vmatpush1.bf16.msra.mxu0 0
        %661 = vmatprep.subr.bf16.mxu0 0
        %662 = vmatpush1.bf16.msra.mxu0 0
        %663 = vmatprep.subr.bf16.mxu0 0
        %664 = vmatpush1.bf16.msra.mxu0 0
        %665 = vmatprep.subr.bf16.mxu0 0
        %666 = vmatpush1.bf16.msra.mxu0 0
        %667 = vmatprep.subr.bf16.mxu0 0
        %668 = vmatpush1.bf16.msra.mxu0 %v649
        %669 = vmatprep.subr.bf16.mxu0 0
        %670 = vmatpush1.bf16.msra.mxu0 %v648
        %671 = vmatprep.subr.bf16.mxu0 0
        %672 = vmatpush2.bf16.msra.mxu0 0
        %673 = vmatprep.subr.bf16.mxu0 0
        %674 = vmatpush2.bf16.msra.mxu0 0
        %675 = vmatprep.subr.bf16.mxu0 0
        %676 = vmatpush2.bf16.msra.mxu0 0
        %677 = vmatprep.subr.bf16.mxu0 0
        %678 = vmatpush2.bf16.msra.mxu0 0
        %679 = vmatprep.subr.bf16.mxu0 0
        %680 = vmatpush2.bf16.msra.mxu0 0
        %681 = vmatprep.subr.bf16.mxu0 0
        %682 = vmatpush2.bf16.msra.mxu0 0
        %683 = vmatprep.subr.bf16.mxu0 0
        %684 = vmatpush2.bf16.msra.mxu0 0
        %685 = vmatprep.subr.bf16.mxu0 0
        %686 = vmatpush2.bf16.msra.mxu0 0
        %687 = vmatprep.mubr.bf16.mxu0 0
        %688 = vmatmul.mubr.bf16.gmra.mxu0 %v653
        %v689 = vpop.f32.mrf.mxu0
        %v690 = vadd.f32 %v638, %v689
        %v691 = vpop.f32.mrf.mxu0
        %v692 = vpop.f32.mrf.mxu0
        %v693 = vadd.f32 %v638, %v692
        %v694 = vpop.f32.mrf.mxu0
        %695 = vdwg.mxu0
        %vm696 = vcmp.lt.s32.totalorder %v534, 96
        %v697 = vsel %vm696, 0.5, 1.0
        %v698 = vmul.f32 %v690, %v697
        %v699 = vmul.f32 %v693, %v697
        %v700 = vtanh.pop %v698
        %v701 = vtanh.pop %v699
        %v702 = vmul.f32 %v700, 0.5
        %v703 = vmul.f32 %v701, 0.5
        %v704 = vadd.f32 %v702, 0.5
        %v705 = vadd.f32 %v703, 0.5
        %708 = vrot.lane.b32.xlu0 %v700, 64
        %v709 = vpop.permute.xlu0 %708
        %710 = vrot.lane.b32.xlu0 %v701, 64
        %v711 = vpop.permute.xlu0 %710
        %v714 = vmul.f32 %v704, %v709
        %v715 = vmul.f32 %v705, %v711
        %716 = vst.msk [vmem:[#allocation2] sm:$0xff] %vm553, %v704
        %717 = vst.msk [vmem:[#allocation2 + $0x8] sm:$0xff] %vm553, %v705
        %720 = vrot.lane.b32.xlu0 %v704, 64
        %v721 = vpop.permute.xlu0 %720
        %722 = vrot.lane.b32.xlu0 %v705, 64
        %v723 = vpop.permute.xlu0 %722
        %726 = vst.msk [vmem:[#allocation5] sm:$0xff] %vm553, %v721
        %727 = vst.msk [vmem:[#allocation5 + $0x8] sm:$0xff] %vm553, %v723
        %730 = vrot.lane.b32.xlu0 %v714, 96
        %v731 = vpop.permute.xlu0 %730
        %732 = vrot.lane.b32.xlu0 %v715, 96
        %v733 = vpop.permute.xlu0 %732
        %v736 = vmul.f32 %v704, %v731
        %v737 = vmul.f32 %v705, %v733
        %740 = vrot.lane.b32.xlu0 %v736, 32
        %v741 = vpop.permute.xlu0 %740
        %742 = vrot.lane.b32.xlu0 %v737, 32
        %v743 = vpop.permute.xlu0 %742
        %v746 = vsub.f32 %v714, %v741
        %v747 = vsub.f32 %v715, %v743
        %750 = vrot.lane.b32.xlu0 %v746, 96
        %v751 = vpop.permute.xlu0 %750
        %752 = vrot.lane.b32.xlu0 %v747, 96
        %v753 = vpop.permute.xlu0 %752
        %756 = vst.msk [vmem:[#allocation3] sm:$0xff] %vm553, %v751
        %757 = vst.msk [vmem:[#allocation3 + $0x8] sm:$0xff] %vm553, %v753
        %v758 = vld [vmem:[#allocation2] sm:$0xff]
        %v759 = vmul.f32 %v758, 0.0
        %v760 = vld [vmem:[#allocation3] sm:$0xff]
        %v761 = vadd.f32 %v759, %v760
        %762 = vst.msk [vmem:[#allocation3] sm:$0xff] %vm553, %v761
        %763 = vst.msk [vmem:[#allocation4] sm:$0xff] %vm553, %v758
        %v764 = vld [vmem:[%s584] sm:$0xff]
        %v765 = vmul.f32 %v764, %v761
        %v766 = vld [vmem:[%s587] sm:$0xff]
        %v767 = vadd.f32 %v765, %v766
        %v768 = vmul.f32 %v758, %v764
        %769 = vst.msk [vmem:[%s587] sm:$0xff] %vm553, %v767
        %770 = vst.msk [vmem:[%s592] sm:$0xff] %vm553, %v768
        %v771 = vld [vmem:[#allocation7] sm:$0x3]
        %v772 = vmul.f32 %v768, %v771
        %v773 = vadd.f32 %v772, %v767
        %v775 = vrot.slane %v773, 6
        %v777 = vmul.f32 %v768, %v775
        %v778 = vadd.f32 %v777, %v767
        %v780 = vrot.slane %v778, 6
        %v782 = vmul.f32 %v768, %v780
        %v783 = vadd.f32 %v782, %v767
        %v785 = vrot.slane %v783, 6
        %v787 = vmul.f32 %v768, %v785
        %v788 = vadd.f32 %v787, %v767
        %789 = vst.msk [vmem:[#allocation7 - $0x6] sm:$0xc0] %vm612, %v788
        %v790 = vsel %vm614, %v771, %v775
        %v791 = vsel %vm616, %v790, %v780
        %v792 = vsel %vm618, %v791, %v785
        %v793 = vld [vmem:[#allocation3] sm:$0xff]
        %v794 = vld [vmem:[#allocation3 + $0x8] sm:$0xff]
        %v795 = vld [vmem:[#allocation4] sm:$0xff]
        %v796 = vld [vmem:[#allocation4 + $0x8] sm:$0xff]
        %v797 = vmul.f32 %v795, %v792
        %v798 = vmul.f32 %v796, %v792
        %v799 = vadd.f32 %v793, %v797
        %v800 = vadd.f32 %v794, %v798
        %v801 = vld [vmem:[#allocation5] sm:$0xff]
        %v802 = vld [vmem:[#allocation5 + $0x8] sm:$0xff]
        %v803 = vmul.f32 %v799, %v801
        %v804 = vmul.f32 %v800, %v802
        %v805 = vpack.c.bf16 %v804, %v803
        %v806 = vld [vmem:[%s444] sm:$0xf]
        %v807 = vld [vmem:[%s444 + $0x4] sm:$0xf]
        %v808 = vld [vmem:[%s444 + $0x8] sm:$0xf]
        %v809 = vld [vmem:[%s444 + $0xc] sm:$0xf]
        %v810 = vld [vmem:[%s447] sm:$0x1]
        %v812 = vlaneseq
        %v813 = vshrl.u32 %v812, 7
        %v814 = vsub.s32 0, %v813
        %v815 = vrot.slane %v810, %v814
        %v821 = vunpack.c.l.b16 %v806
        %v822 = vunpack.c.l.b16 %v807
        %v823 = vunpack.c.l.b16 %v808
        %v824 = vunpack.c.l.b16 %v809
        %v825 = vpack.c.b16 %v822, %v821
        %v826 = vpack.c.b16 %v824, %v823
        %v830 = vsel %vm553, %v805, 0
        %832 = vmatprep.subr.bf16.mxu0 0
        %833 = vmatpush1.bf16.msra.mxu0 0
        %834 = vmatprep.subr.bf16.mxu0 0
        %835 = vmatpush1.bf16.msra.mxu0 0
        %836 = vmatprep.subr.bf16.mxu0 0
        %837 = vmatpush1.bf16.msra.mxu0 0
        %838 = vmatprep.subr.bf16.mxu0 0
        %839 = vmatpush1.bf16.msra.mxu0 0
        %840 = vmatprep.subr.bf16.mxu0 0
        %841 = vmatpush1.bf16.msra.mxu0 0
        %842 = vmatprep.subr.bf16.mxu0 0
        %843 = vmatpush1.bf16.msra.mxu0 0
        %844 = vmatprep.subr.bf16.mxu0 0
        %845 = vmatpush1.bf16.msra.mxu0 %v826
        %846 = vmatprep.subr.bf16.mxu0 0
        %847 = vmatpush1.bf16.msra.mxu0 %v825
        %848 = vmatprep.subr.bf16.mxu0 0
        %849 = vmatpush2.bf16.msra.mxu0 0
        %850 = vmatprep.subr.bf16.mxu0 0
        %851 = vmatpush2.bf16.msra.mxu0 0
        %852 = vmatprep.subr.bf16.mxu0 0
        %853 = vmatpush2.bf16.msra.mxu0 0
        %854 = vmatprep.subr.bf16.mxu0 0
        %855 = vmatpush2.bf16.msra.mxu0 0
        %856 = vmatprep.subr.bf16.mxu0 0
        %857 = vmatpush2.bf16.msra.mxu0 0
        %858 = vmatprep.subr.bf16.mxu0 0
        %859 = vmatpush2.bf16.msra.mxu0 0
        %860 = vmatprep.subr.bf16.mxu0 0
        %861 = vmatpush2.bf16.msra.mxu0 0
        %862 = vmatprep.subr.bf16.mxu0 0
        %863 = vmatpush2.bf16.msra.mxu0 0
        %864 = vmatprep.mubr.bf16.mxu0 0
        %865 = vmatmul.mubr.bf16.gmra.mxu0 %v830
        %v866 = vpop.f32.mrf.mxu0
        %v867 = vadd.f32 %v815, %v866
        %v868 = vpop.f32.mrf.mxu0
        %v869 = vpop.f32.mrf.mxu0
        %v870 = vadd.f32 %v815, %v869
        %v871 = vpop.f32.mrf.mxu0
        %872 = vdwg.mxu0
        %873 = vst.msk [vmem:[%s456] sm:$0xff] %vm553, %v867
        %874 = vst.msk [vmem:[%s456 + $0x8] sm:$0xff] %vm553, %v870
        // Predicated region
        $region53: #{egilr_lstm_forward.1} parent=47 // pred_check
          %p875 = pneg %p459
        $region54: #{egilr_lstm_forward.1} parent=47 // pred_check_branch
          %877 = sbr.rel (%p875) target = $region56
        $region55: #{egilr_lstm_forward.1} parent=47 // pred_region
          %v878 = vld [vmem:[#allocation6] sm:$0x3]
          %vm879 = vcmask 254976
          %880 = vst.msk [vmem:[%s413] sm:$0x3] %vm879, %v878
          %v881 = vld [vmem:[#allocation7] sm:$0x3]
          %883 = vrot.lane.b32.xlu0 %v881, 32
          %v884 = vpop.permute.xlu0 %883
          %vm886 = vcmask 517376
          %887 = vst.msk [vmem:[%s413] sm:$0x3] %vm886, %v884
        $region56: #{egilr_lstm_forward.1} parent=47 // pred_fallthru
          _
        %s888 = smul.u32 2, %s28
        %p889 = scmp.lt.s32.totalorder %s27, 2
        %s890 = scalar_select %p889, %s27, 2
        %p891 = scmp.lt.s32.totalorder %s888, 1
        %s892 = scalar_select %p891, %s888, 1
        %s893 = smul.addr %s890, 2
        %s894 = sadd.s32 %s892, %s893
        %s895 = smul.addr %s894, 8
        %s896 = scalar_lea.vmem %s7, %s895
        %s897 = sand.u32 %s255, 1
        %s898 = scalar_lea.sflag [#allocation9], %s897
        %s899 = sand.u32 %s255, 1
        %s900 = smul.addr %s899, 2
        %s901 = scalar_lea.vmem [#allocation8], %s900
        // Predicated region
        $region57: #{egilr_lstm_forward.1} parent=47 // pred_check
          %p902 = pneg %p239
        $region58: #{egilr_lstm_forward.1} parent=47 // pred_check_branch
          %904 = sbr.rel (%p902) target = $region60
        $region59: #{egilr_lstm_forward.1} parent=47 // pred_region
          %s905 = smul.u32 2, %s28
        $region60: #{egilr_lstm_forward.1} parent=47 // pred_fallthru
          _
        // Predicated region
        $region61: #{egilr_lstm_forward.1} parent=47 // pred_check
          %p906 = pneg %p265
        $region62: #{egilr_lstm_forward.1} parent=47 // pred_check_branch
          %908 = sbr.rel (%p906) target = $region64
        $region63: #{egilr_lstm_forward.1} parent=47 // pred_region
          %s910 = ssub.s32 32, 32
          %911 = vsyncadd %s898, %s910
          %s912 = smul.addr %s27, 32
          %s913 = scalar_lea.hbm %s8, %s912
          %s915 = sshll.u32 %s901, 4
          %s916 = int_to_ptr.vmem [resolvable:$true] %s915
          %918 = dma.vmem_to_hbm [thread:$0]  %s916, 32, %s913, %s898
        $region64: #{egilr_lstm_forward.1} parent=47 // pred_fallthru
          _
      $region48: #{egilr_lstm_forward.1} parent=5 // pred_fallthru
        _
      %p919 = scmp.le.s32.totalorder 2, %s18
      // Predicated region
      $region65: #{egilr_lstm_forward.1} parent=5 // pred_check
        %p920 = pneg %p919
      $region66: #{egilr_lstm_forward.1} parent=5 // pred_check_branch
        %922 = sbr.rel (%p920) target = $region68
      $region67: #{egilr_lstm_forward.1} parent=5 // pred_region
        %s923 = ssub.s32 %s18, 2
        // Predicated region
        $region69: #{egilr_lstm_forward.1} parent=67 // pred_check
          %p924 = pneg %p245
        $region70: #{egilr_lstm_forward.1} parent=67 // pred_check_branch
          %926 = sbr.rel (%p924) target = $region72
        $region71: #{egilr_lstm_forward.1} parent=67 // pred_region
          %s927 = smul.u32 2, %s30
          %p928 = scmp.lt.s32.totalorder %s29, 2
          %s929 = scalar_select %p928, %s29, 2
          %p930 = scmp.lt.s32.totalorder %s927, 1
          %s931 = scalar_select %p930, %s927, 1
          %s932 = smul.addr %s929, 2
          %s933 = sadd.s32 %s931, %s932
          %s934 = smul.addr %s933, 8
          %s935 = scalar_lea.vmem %s7, %s934
        $region72: #{egilr_lstm_forward.1} parent=67 // pred_fallthru
          _
        // Predicated region
        $region73: #{egilr_lstm_forward.1} parent=67 // pred_check
          %p936 = pneg %p271
        $region74: #{egilr_lstm_forward.1} parent=67 // pred_check_branch
          %938 = sbr.rel (%p936) target = $region76
        $region75: #{egilr_lstm_forward.1} parent=67 // pred_region
          %s939 = sand.u32 %s256, 1
          %s940 = scalar_lea.sflag [#allocation9], %s939
          %s941 = sand.u32 %s256, 1
          %s942 = smul.addr %s941, 2
          %s943 = scalar_lea.vmem [#allocation8], %s942
          %944 = dma.done %s940, 32
        $region76: #{egilr_lstm_forward.1} parent=67 // pred_fallthru
          _
      $region68: #{egilr_lstm_forward.1} parent=5 // pred_fallthru
        _
    $region6: #{egilr_lstm_forward.1} parent=1 // loop_footer
      %s22 = sadd.s32 1, %s18
    $region7: #{egilr_lstm_forward.1} parent=1 // loop_footer_branch
      %17 = sbr.rel target = $region3
    $region8: #{egilr_lstm_forward.1} parent=1 // loop_exit
      _
    %945 = vsyncpa [#allocation9], 1
    %s946 = scalar_lea.sflag [#allocation9], 1
    %947 = vsyncpa %s946, 1

</llo_original>
